<compile_context>
chip_gen: v7x
topology: tpu7x:2x2x1
jax: 0.10.0
libtpu: 0.0.40
codegen_flags: <defaults>
</compile_context>

<pallas_src>
import jax
import jax.numpy as jnp
from jax.experimental import pallas as pl
from jax.experimental.pallas import tpu as pltpu


def _lstm_kernel(x_ref, wih_ref, whh_ref, b_ref,
                 out_ref, hid_ref, cell_ref,
                 h_sc, c_sc, g_sc):
    """One grid step = one chunk of T time steps.

    x_ref   : (T*Np, E)    pre-flattened input chunk
    wih_ref : (E, 4Hp)     fused input->gate weights, gate order [i, f, o, g],
                           each gate zero-padded to Hp lanes
    whh_ref : (Hp, 4Hp)    fused hidden->gate weights (zero-padded rows/cols)
    b_ref   : (1, 4Hp)     fused bias (b_ih + b_hh), zero-padded, f32
    out_ref : (T, Np, Hp)  per-step hidden states (lane-dense, wrapper slices :H)
    hid_ref : (1, Np, Hp)  final hidden (written on last chunk only)
    cell_ref: (1, Np, Hp)  final cell   (written on last chunk only)
    h_sc,c_sc: (Np, Hp) f32 recurrent carry (VMEM scratch, persists across chunks)
    g_sc    : (T*Np, 4Hp)  hoisted input projection for this chunk
    """
    chunk = pl.program_id(0)
    Np, Hp = h_sc.shape
    TN, _E = x_ref.shape
    T = TN // Np

    @pl.when(chunk == 0)
    def _():
        h_sc[...] = jnp.zeros_like(h_sc)
        c_sc[...] = jnp.zeros_like(c_sc)

    # ---- Phase 1 (time independent): x @ W_ih^T + b for the whole chunk. -------
    # One lane-dense (T*Np, E) x (E, 4Hp) MXU GEMM; no in-kernel reshapes.
    proj = jnp.dot(x_ref[...].astype(wih_ref.dtype), wih_ref[...],
                   preferred_element_type=jnp.float32)
    g_sc[...] = proj + b_ref[...]

    whh = whh_ref[...]

    # ---- Phase 2: serial recurrence — one (Np, Hp) x (Hp, 4Hp) matmul per step. --
    def step(t, carry):
        h, c = carry
        row = pl.multiple_of(t * Np, Np)                       # aligned sublane slice
        gates = g_sc[pl.ds(row, Np), :] + jnp.dot(
            h.astype(whh.dtype), whh, preferred_element_type=jnp.float32)  # (Np, 4Hp)
        # Gate slabs are vreg-aligned (each Hp lanes): no XLU realignment needed.
        ifo = jax.nn.sigmoid(gates[:, :3 * Hp])                # i | f | o, one EUP slab
        g = jnp.tanh(gates[:, 3 * Hp:])                        # g slab
        c_new = ifo[:, Hp:2 * Hp] * c + ifo[:, :Hp] * g
        h_new = ifo[:, 2 * Hp:] * jnp.tanh(c_new)
        out_ref[t] = h_new                                     # unmasked 128-lane store
        return h_new, c_new

    h_f, c_f = jax.lax.fori_loop(0, T, step, (h_sc[...], c_sc[...]),
                                 unroll=min(T, 8))
    h_sc[...] = h_f
    c_sc[...] = c_f

    # Constant out_spec index across the 'arbitrary' grid axis keeps these blocks
    # VMEM-resident; only this last-chunk write is flushed to HBM (last-write-wins).
    @pl.when(chunk == pl.num_programs(0) - 1)
    def _():
        hid_ref[0] = h_f
        cell_ref[0] = c_f


def _repack_gates(weight_ih, weight_hh, bias_ih, bias_hh, H, Hp, compute_dtype):
    """PyTorch gate blocks [i, f, g, o] -> fused, transposed, per-gate lane-padded
    [i, f, o, g] matrices: W_ih^T (E, 4Hp), W_hh^T (Hp, 4Hp), bias (1, 4Hp)."""
    def split_ifog(a):
        i, f, g, o = jnp.split(a, 4, axis=0)
        return [i, f, o, g]

    pad_c = Hp - H
    wih = jnp.concatenate(
        [jnp.pad(blk.T, ((0, 0), (0, pad_c))) for blk in split_ifog(weight_ih)],
        axis=1)                                                  # (E, 4Hp)
    whh = jnp.concatenate(
        [jnp.pad(blk.T, ((0, pad_c), (0, pad_c))) for blk in split_ifog(weight_hh)],
        axis=1)                                                  # (Hp, 4Hp)
    b = jnp.concatenate(
        [jnp.pad(blk, (0, pad_c)) for blk in split_ifog(bias_ih + bias_hh)])
    return (wih.astype(compute_dtype),
            whh.astype(compute_dtype),
            b.reshape(1, 4 * Hp).astype(jnp.float32))


def lstm_encoder(x, weight_ih, weight_hh, bias_ih, bias_hh,
                 *, time_block=None, compute_dtype=jnp.bfloat16):
    """Single-layer LSTM forward (PyTorch nn.LSTM semantics, zero init state).

    x:          (S, N, E) float32
    weight_ih:  (4H, E)   rows ordered [i, f, g, o]
    weight_hh:  (4H, H)
    bias_ih:    (4H,)
    bias_hh:    (4H,)
    returns (out (S,N,H), hidden (1,N,H), cell (1,N,H)), all float32.
    """
    S, N, E = x.shape
    H = weight_hh.shape[1]
    Hp = ((H + 127) // 128) * 128          # pad each gate to full 128-lane slabs
    H4p = 4 * Hp

    # Chunk the sequence: whole sequence for short S; several chunks for long S so
    # the pipeline can overlap DMA with the serial recurrence and bound VMEM.
    if time_block is None:
        if S <= 64:
            time_block = S
        else:
            target = max(16, S // 8)
            time_block = max(d for d in range(1, S + 1) if S % d == 0 and d <= target)
    assert S % time_block == 0, "time_block must divide the sequence length"
    T = time_block

    # Pad batch to a full sublane group (>=8 rows); padded rows are sliced off.
    Np = max(8, ((N + 7) // 8) * 8)
    if Np != N:
        x = jnp.pad(x, ((0, 0), (0, Np - N), (0, 0)))
    x2 = x.reshape(S * Np, E)              # pre-flattened: no in-kernel reshape

    wih, whh, b = _repack_gates(weight_ih, weight_hh, bias_ih, bias_hh,
                                H, Hp, compute_dtype)

    cd = jnp.dtype(compute_dtype).itemsize
    vmem_est = (2 * T * Np * E * cd                    # x chunk, double-buffered
                + 2 * T * Np * Hp * 4                  # out chunk, double-buffered
                + T * Np * H4p * 4                     # g_sc scratch
                + 2 * (E * H4p + Hp * H4p) * cd        # weights (double-buffered)
                + 4 * Np * Hp * 4                      # h/c scratch + hid/cell blocks
                + (1 << 20))                           # slack
    vmem_limit = int(min(max(2 * vmem_est, 32 << 20), 64 << 20))  # v7x-safe cap

    out_p, hid_p, cell_p = pl.pallas_call(
        _lstm_kernel,
        out_shape=(
            jax.ShapeDtypeStruct((S, Np, Hp), jnp.float32),
            jax.ShapeDtypeStruct((1, Np, Hp), jnp.float32),
            jax.ShapeDtypeStruct((1, Np, Hp), jnp.float32),
        ),
        grid_spec=pltpu.PrefetchScalarGridSpec(
            num_scalar_prefetch=0,
            grid=(S // T,),
            in_specs=[
                pl.BlockSpec((T * Np, E), lambda c: (c, 0)),   # x chunk (flattened)
                # Weights/bias: constant index_map -> fetched once, stays resident.
                pl.BlockSpec((E, H4p), lambda c: (0, 0)),      # fused W_ih^T
                pl.BlockSpec((Hp, H4p), lambda c: (0, 0)),     # fused W_hh^T
                pl.BlockSpec((1, H4p), lambda c: (0, 0)),      # fused bias
            ],
            out_specs=[
                pl.BlockSpec((T, Np, Hp), lambda c: (c, 0, 0)),   # out chunk
                pl.BlockSpec((1, Np, Hp), lambda c: (0, 0, 0)),   # final hidden
                pl.BlockSpec((1, Np, Hp), lambda c: (0, 0, 0)),   # final cell
            ],
            scratch_shapes=[
                pltpu.VMEM((Np, Hp), jnp.float32),        # h carry
                pltpu.VMEM((Np, Hp), jnp.float32),        # c carry
                pltpu.VMEM((T * Np, H4p), jnp.float32),   # hoisted input projection
            ],
        ),
        compiler_params=pltpu.CompilerParams(
            dimension_semantics=("arbitrary",),      # recurrence => sequential chunks
            vmem_limit_bytes=vmem_limit,
        ),
    )(x2, wih, whh, b)

    return (out_p[:, :N, :H], hid_p[:, :N, :H], cell_p[:, :N, :H])


def _lstm_reference(x, weight_ih, weight_hh, bias_ih, bias_hh):
    """Pure-JAX reference (PyTorch nn.LSTM math) for correctness checking."""
    S, N, E = x.shape
    H = weight_hh.shape[1]
    h0 = jnp.zeros((N, H), jnp.float32)
    c0 = jnp.zeros((N, H), jnp.float32)

    def step(carry, x_t):
        h, c = carry
        gates = x_t @ weight_ih.T + bias_ih + h @ weight_hh.T + bias_hh
        i, f, g, o = jnp.split(gates, 4, axis=-1)
        c_new = jax.nn.sigmoid(f) * c + jax.nn.sigmoid(i) * jnp.tanh(g)
        h_new = jax.nn.sigmoid(o) * jnp.tanh(c_new)
        return (h_new, c_new), h_new

    (h_f, c_f), outs = jax.lax.scan(step, (h0, c0), x)
    return outs, h_f[None], c_f[None]


if __name__ == "__main__":
    S, N, E, H = 8, 2, 16, 32  # seq len, batch, input size, hidden size

    key = jax.random.PRNGKey(0)
    kx, k1, k2, k3, k4 = jax.random.split(key, 5)

    # PyTorch nn.LSTM init: uniform(-1/sqrt(H), 1/sqrt(H)) for all params.
    bound = 1.0 / (H ** 0.5)
    x = jax.random.normal(kx, (S, N, E), dtype=jnp.float32)
    weight_ih = jax.random.uniform(k1, (4 * H, E), jnp.float32, -bound, bound)
    weight_hh = jax.random.uniform(k2, (4 * H, H), jnp.float32, -bound, bound)
    bias_ih = jax.random.uniform(k3, (4 * H,), jnp.float32, -bound, bound)
    bias_hh = jax.random.uniform(k4, (4 * H,), jnp.float32, -bound, bound)

    out_r, hid_r, cell_r = _lstm_reference(x, weight_ih, weight_hh, bias_ih, bias_hh)

    # f32 matmul path: exact parity with the PyTorch/JAX reference.
    out32, hid32, cell32 = jax.block_until_ready(
        lstm_encoder(x, weight_ih, weight_hh, bias_ih, bias_hh,
                     compute_dtype=jnp.float32))
    assert out32.shape == (S, N, H)
    assert hid32.shape == (1, N, H) and cell32.shape == (1, N, H)
    assert jnp.allclose(out32, out_r, atol=1e-5, rtol=1e-5)
    assert jnp.allclose(hid32, hid_r, atol=1e-5, rtol=1e-5)
    assert jnp.allclose(cell32, cell_r, atol=1e-5, rtol=1e-5)

    # Default path (bf16 matmul operands, f32 accumulation/state): looser tolerance.
    out, hidden, cell = jax.block_until_ready(
        lstm_encoder(x, weight_ih, weight_hh, bias_ih, bias_hh))
    assert out.shape == (S, N, H)
    assert hidden.shape == (1, N, H) and cell.shape == (1, N, H)
    assert jnp.allclose(out, out_r, atol=5e-2, rtol=5e-2)
    assert jnp.allclose(hidden, hid_r, atol=5e-2, rtol=5e-2)
    assert jnp.allclose(cell, cell_r, atol=5e-2, rtol=5e-2)

    print("KERNEL_OK")
</pallas_src>

<mosaic_0001>
module attributes {stable_mosaic.version = 11 : i64} {
  func.func @_lstm_kernel(%arg0: i32, %arg1: memref<64x16xf32, #tpu.memory_space<vmem>>, %arg2: memref<16x512xf32, #tpu.memory_space<vmem>>, %arg3: memref<128x512xf32, #tpu.memory_space<vmem>>, %arg4: memref<1x512xf32, #tpu.memory_space<vmem>>, %arg5: memref<8x8x128xf32, #tpu.memory_space<vmem>>, %arg6: memref<1x8x128xf32, #tpu.memory_space<vmem>>, %arg7: memref<1x8x128xf32, #tpu.memory_space<vmem>>, %arg8: memref<8x128xf32, #tpu.memory_space<vmem>>, %arg9: memref<8x128xf32, #tpu.memory_space<vmem>>, %arg10: memref<64x512xf32, #tpu.memory_space<vmem>>) attributes {dimension_semantics = [#tpu.dimension_semantics<arbitrary>], iteration_bounds = array<i64: 1>, scalar_prefetch = 0 : i64, scratch_operands = 3 : i64, tpu.core_type = #tpu.core_type<tc>, window_params = [{transform_indices = @transform_0, window_bounds = array<i64: 64, 16>}, {pipeline_mode = #tpu.pipeline_mode<synchronous>, transform_indices = @transform_1, window_bounds = array<i64: 16, 512>}, {pipeline_mode = #tpu.pipeline_mode<synchronous>, transform_indices = @transform_2, window_bounds = array<i64: 128, 512>}, {pipeline_mode = #tpu.pipeline_mode<synchronous>, transform_indices = @transform_3, window_bounds = array<i64: 1, 512>}, {transform_indices = @transform_4, window_bounds = array<i64: 8, 8, 128>}, {pipeline_mode = #tpu.pipeline_mode<synchronous>, transform_indices = @transform_5, window_bounds = array<i64: 1, 8, 128>}, {pipeline_mode = #tpu.pipeline_mode<synchronous>, transform_indices = @transform_6, window_bounds = array<i64: 1, 8, 128>}]} {
    %c0_i32 = arith.constant 0 : i32
    %0 = arith.cmpi eq, %arg0, %c0_i32 : i32
    %1 = arith.extui %0 : i1 to i32
    %c0_i32_0 = arith.constant 0 : i32
    %2 = arith.cmpi ne, %1, %c0_i32_0 : i32
    scf.if %2 {
      %cst_69 = arith.constant 0.000000e+00 : f32
      %226 = vector.broadcast %cst_69 : f32 to vector<8x128xf32>
      %c0_70 = arith.constant 0 : index
      %c0_71 = arith.constant 0 : index
      %227 = vector.load %arg8[%c0_70, %c0_71] : memref<8x128xf32, #tpu.memory_space<vmem>>, vector<8x128xf32>
      tpu.vector_store %arg8[%c0_70, %c0_71], %226 {strides = array<i32>} : memref<8x128xf32, #tpu.memory_space<vmem>>, vector<8x128xf32>,
      %cst_72 = arith.constant 0.000000e+00 : f32
      %228 = vector.broadcast %cst_72 : f32 to vector<8x128xf32>
      %c0_73 = arith.constant 0 : index
      %c0_74 = arith.constant 0 : index
      %229 = vector.load %arg9[%c0_73, %c0_74] : memref<8x128xf32, #tpu.memory_space<vmem>>, vector<8x128xf32>
      tpu.vector_store %arg9[%c0_73, %c0_74], %228 {strides = array<i32>} : memref<8x128xf32, #tpu.memory_space<vmem>>, vector<8x128xf32>,
    } else {
    }
    %c0 = arith.constant 0 : index
    %c0_1 = arith.constant 0 : index
    %3 = vector.load %arg1[%c0, %c0_1] : memref<64x16xf32, #tpu.memory_space<vmem>>, vector<64x16xf32>
    %c0_2 = arith.constant 0 : index
    %c0_3 = arith.constant 0 : index
    %4 = vector.load %arg2[%c0_2, %c0_3] : memref<16x512xf32, #tpu.memory_space<vmem>>, vector<16x512xf32>
    %cst = arith.constant dense<0.000000e+00> : vector<64x512xf32>
    %5 = tpu.matmul %3, %4, %cst {dimension_numbers = #tpu.dot_dimension_numbers<[1], [0], [0], [1], [0, 0, 1, 1], [], []>} : vector<64x16xf32>, vector<16x512xf32>, vector<64x512xf32> -> vector<64x512xf32>
    %c0_4 = arith.constant 0 : index
    %c0_5 = arith.constant 0 : index
    %6 = vector.load %arg4[%c0_4, %c0_5] : memref<1x512xf32, #tpu.memory_space<vmem>>, vector<1x512xf32>
    %7 = vector.broadcast %6 : vector<1x512xf32> to vector<64x512xf32>
    %8 = arith.addf %5, %7 : vector<64x512xf32>
    %c0_6 = arith.constant 0 : index
    %c0_7 = arith.constant 0 : index
    %9 = vector.load %arg10[%c0_6, %c0_7] : memref<64x512xf32, #tpu.memory_space<vmem>>, vector<64x512xf32>
    tpu.vector_store %arg10[%c0_6, %c0_7], %8 {strides = array<i32>} : memref<64x512xf32, #tpu.memory_space<vmem>>, vector<64x512xf32>,
    %c0_8 = arith.constant 0 : index
    %c0_9 = arith.constant 0 : index
    %10 = vector.load %arg3[%c0_8, %c0_9] : memref<128x512xf32, #tpu.memory_space<vmem>>, vector<128x512xf32>
    %c0_10 = arith.constant 0 : index
    %c0_11 = arith.constant 0 : index
    %11 = vector.load %arg8[%c0_10, %c0_11] : memref<8x128xf32, #tpu.memory_space<vmem>>, vector<8x128xf32>
    %c0_12 = arith.constant 0 : index
    %c0_13 = arith.constant 0 : index
    %12 = vector.load %arg9[%c0_12, %c0_13] : memref<8x128xf32, #tpu.memory_space<vmem>>, vector<8x128xf32>
    %c0_i32_14 = arith.constant 0 : i32
    %c8_i32 = arith.constant 8 : i32
    %13 = arith.muli %c0_i32_14, %c8_i32 : i32
    %14 = tpu.assume_multiple %13, 8 : i32
    %15 = arith.index_cast %14 : i32 to index
    %c0_15 = arith.constant 0 : index
    %16 = vector.load %arg10[%15, %c0_15] : memref<64x512xf32, #tpu.memory_space<vmem>>, vector<8x512xf32>
    %cst_16 = arith.constant dense<0.000000e+00> : vector<8x512xf32>
    %17 = tpu.matmul %11, %10, %cst_16 {dimension_numbers = #tpu.dot_dimension_numbers<[1], [0], [0], [1], [0, 0, 1, 1], [], []>} : vector<8x128xf32>, vector<128x512xf32>, vector<8x512xf32> -> vector<8x512xf32>
    %18 = arith.addf %16, %17 : vector<8x512xf32>
    %19 = vector.extract_strided_slice %18 {offsets = [0, 0], sizes = [8, 384], strides = [1, 1]} : vector<8x512xf32> to vector<8x384xf32>
    %20 = arith.negf %19 : vector<8x384xf32>
    %21 = math.exp %20 : vector<8x384xf32>
    %cst_17 = arith.constant 1.000000e+00 : f32
    %22 = vector.broadcast %cst_17 : f32 to vector<8x384xf32>
    %23 = arith.addf %22, %21 : vector<8x384xf32>
    %24 = arith.divf %22, %23 : vector<8x384xf32>
    %25 = vector.extract_strided_slice %18 {offsets = [0, 384], sizes = [8, 128], strides = [1, 1]} : vector<8x512xf32> to vector<8x128xf32>
    %26 = math.tanh %25 : vector<8x128xf32>
    %27 = vector.extract_strided_slice %24 {offsets = [0, 128], sizes = [8, 128], strides = [1, 1]} : vector<8x384xf32> to vector<8x128xf32>
    %28 = arith.mulf %27, %12 : vector<8x128xf32>
    %29 = vector.extract_strided_slice %24 {offsets = [0, 0], sizes = [8, 128], strides = [1, 1]} : vector<8x384xf32> to vector<8x128xf32>
    %30 = arith.mulf %29, %26 : vector<8x128xf32>
    %31 = arith.addf %28, %30 : vector<8x128xf32>
    %32 = vector.extract_strided_slice %24 {offsets = [0, 256], sizes = [8, 128], strides = [1, 1]} : vector<8x384xf32> to vector<8x128xf32>
    %33 = math.tanh %31 : vector<8x128xf32>
    %34 = arith.mulf %32, %33 : vector<8x128xf32>
    %35 = arith.index_cast %c0_i32_14 : i32 to index
    %c0_18 = arith.constant 0 : index
    %c0_19 = arith.constant 0 : index
    %36 = vector.load %arg5[%35, %c0_18, %c0_19] : memref<8x8x128xf32, #tpu.memory_space<vmem>>, vector<1x8x128xf32>
    %37 = vector.shape_cast %36 : vector<1x8x128xf32> to vector<8x128xf32>
    %38 = vector.shape_cast %34 : vector<8x128xf32> to vector<1x8x128xf32>
    tpu.vector_store %arg5[%35, %c0_18, %c0_19], %38 {strides = array<i32>} : memref<8x8x128xf32, #tpu.memory_space<vmem>>, vector<1x8x128xf32>,
    %c1_i32 = arith.constant 1 : i32
    %c8_i32_20 = arith.constant 8 : i32
    %39 = arith.muli %c1_i32, %c8_i32_20 : i32
    %40 = tpu.assume_multiple %39, 8 : i32
    %41 = arith.index_cast %40 : i32 to index
    %c0_21 = arith.constant 0 : index
    %42 = vector.load %arg10[%41, %c0_21] : memref<64x512xf32, #tpu.memory_space<vmem>>, vector<8x512xf32>
    %cst_22 = arith.constant dense<0.000000e+00> : vector<8x512xf32>
    %43 = tpu.matmul %34, %10, %cst_22 {dimension_numbers = #tpu.dot_dimension_numbers<[1], [0], [0], [1], [0, 0, 1, 1], [], []>} : vector<8x128xf32>, vector<128x512xf32>, vector<8x512xf32> -> vector<8x512xf32>
    %44 = arith.addf %42, %43 : vector<8x512xf32>
    %45 = vector.extract_strided_slice %44 {offsets = [0, 0], sizes = [8, 384], strides = [1, 1]} : vector<8x512xf32> to vector<8x384xf32>
    %46 = arith.negf %45 : vector<8x384xf32>
    %47 = math.exp %46 : vector<8x384xf32>
    %cst_23 = arith.constant 1.000000e+00 : f32
    %48 = vector.broadcast %cst_23 : f32 to vector<8x384xf32>
    %49 = arith.addf %48, %47 : vector<8x384xf32>
    %50 = arith.divf %48, %49 : vector<8x384xf32>
    %51 = vector.extract_strided_slice %44 {offsets = [0, 384], sizes = [8, 128], strides = [1, 1]} : vector<8x512xf32> to vector<8x128xf32>
    %52 = math.tanh %51 : vector<8x128xf32>
    %53 = vector.extract_strided_slice %50 {offsets = [0, 128], sizes = [8, 128], strides = [1, 1]} : vector<8x384xf32> to vector<8x128xf32>
    %54 = arith.mulf %53, %31 : vector<8x128xf32>
    %55 = vector.extract_strided_slice %50 {offsets = [0, 0], sizes = [8, 128], strides = [1, 1]} : vector<8x384xf32> to vector<8x128xf32>
    %56 = arith.mulf %55, %52 : vector<8x128xf32>
    %57 = arith.addf %54, %56 : vector<8x128xf32>
    %58 = vector.extract_strided_slice %50 {offsets = [0, 256], sizes = [8, 128], strides = [1, 1]} : vector<8x384xf32> to vector<8x128xf32>
    %59 = math.tanh %57 : vector<8x128xf32>
    %60 = arith.mulf %58, %59 : vector<8x128xf32>
    %61 = arith.index_cast %c1_i32 : i32 to index
    %c0_24 = arith.constant 0 : index
    %c0_25 = arith.constant 0 : index
    %62 = vector.load %arg5[%61, %c0_24, %c0_25] : memref<8x8x128xf32, #tpu.memory_space<vmem>>, vector<1x8x128xf32>
    %63 = vector.shape_cast %62 : vector<1x8x128xf32> to vector<8x128xf32>
    %64 = vector.shape_cast %60 : vector<8x128xf32> to vector<1x8x128xf32>
    tpu.vector_store %arg5[%61, %c0_24, %c0_25], %64 {strides = array<i32>} : memref<8x8x128xf32, #tpu.memory_space<vmem>>, vector<1x8x128xf32>,
    %c2_i32 = arith.constant 2 : i32
    %c8_i32_26 = arith.constant 8 : i32
    %65 = arith.muli %c2_i32, %c8_i32_26 : i32
    %66 = tpu.assume_multiple %65, 8 : i32
    %67 = arith.index_cast %66 : i32 to index
    %c0_27 = arith.constant 0 : index
    %68 = vector.load %arg10[%67, %c0_27] : memref<64x512xf32, #tpu.memory_space<vmem>>, vector<8x512xf32>
    %cst_28 = arith.constant dense<0.000000e+00> : vector<8x512xf32>
    %69 = tpu.matmul %60, %10, %cst_28 {dimension_numbers = #tpu.dot_dimension_numbers<[1], [0], [0], [1], [0, 0, 1, 1], [], []>} : vector<8x128xf32>, vector<128x512xf32>, vector<8x512xf32> -> vector<8x512xf32>
    %70 = arith.addf %68, %69 : vector<8x512xf32>
    %71 = vector.extract_strided_slice %70 {offsets = [0, 0], sizes = [8, 384], strides = [1, 1]} : vector<8x512xf32> to vector<8x384xf32>
    %72 = arith.negf %71 : vector<8x384xf32>
    %73 = math.exp %72 : vector<8x384xf32>
    %cst_29 = arith.constant 1.000000e+00 : f32
    %74 = vector.broadcast %cst_29 : f32 to vector<8x384xf32>
    %75 = arith.addf %74, %73 : vector<8x384xf32>
    %76 = arith.divf %74, %75 : vector<8x384xf32>
    %77 = vector.extract_strided_slice %70 {offsets = [0, 384], sizes = [8, 128], strides = [1, 1]} : vector<8x512xf32> to vector<8x128xf32>
    %78 = math.tanh %77 : vector<8x128xf32>
    %79 = vector.extract_strided_slice %76 {offsets = [0, 128], sizes = [8, 128], strides = [1, 1]} : vector<8x384xf32> to vector<8x128xf32>
    %80 = arith.mulf %79, %57 : vector<8x128xf32>
    %81 = vector.extract_strided_slice %76 {offsets = [0, 0], sizes = [8, 128], strides = [1, 1]} : vector<8x384xf32> to vector<8x128xf32>
    %82 = arith.mulf %81, %78 : vector<8x128xf32>
    %83 = arith.addf %80, %82 : vector<8x128xf32>
    %84 = vector.extract_strided_slice %76 {offsets = [0, 256], sizes = [8, 128], strides = [1, 1]} : vector<8x384xf32> to vector<8x128xf32>
    %85 = math.tanh %83 : vector<8x128xf32>
    %86 = arith.mulf %84, %85 : vector<8x128xf32>
    %87 = arith.index_cast %c2_i32 : i32 to index
    %c0_30 = arith.constant 0 : index
    %c0_31 = arith.constant 0 : index
    %88 = vector.load %arg5[%87, %c0_30, %c0_31] : memref<8x8x128xf32, #tpu.memory_space<vmem>>, vector<1x8x128xf32>
    %89 = vector.shape_cast %88 : vector<1x8x128xf32> to vector<8x128xf32>
    %90 = vector.shape_cast %86 : vector<8x128xf32> to vector<1x8x128xf32>
    tpu.vector_store %arg5[%87, %c0_30, %c0_31], %90 {strides = array<i32>} : memref<8x8x128xf32, #tpu.memory_space<vmem>>, vector<1x8x128xf32>,
    %c3_i32 = arith.constant 3 : i32
    %c8_i32_32 = arith.constant 8 : i32
    %91 = arith.muli %c3_i32, %c8_i32_32 : i32
    %92 = tpu.assume_multiple %91, 8 : i32
    %93 = arith.index_cast %92 : i32 to index
    %c0_33 = arith.constant 0 : index
    %94 = vector.load %arg10[%93, %c0_33] : memref<64x512xf32, #tpu.memory_space<vmem>>, vector<8x512xf32>
    %cst_34 = arith.constant dense<0.000000e+00> : vector<8x512xf32>
    %95 = tpu.matmul %86, %10, %cst_34 {dimension_numbers = #tpu.dot_dimension_numbers<[1], [0], [0], [1], [0, 0, 1, 1], [], []>} : vector<8x128xf32>, vector<128x512xf32>, vector<8x512xf32> -> vector<8x512xf32>
    %96 = arith.addf %94, %95 : vector<8x512xf32>
    %97 = vector.extract_strided_slice %96 {offsets = [0, 0], sizes = [8, 384], strides = [1, 1]} : vector<8x512xf32> to vector<8x384xf32>
    %98 = arith.negf %97 : vector<8x384xf32>
    %99 = math.exp %98 : vector<8x384xf32>
    %cst_35 = arith.constant 1.000000e+00 : f32
    %100 = vector.broadcast %cst_35 : f32 to vector<8x384xf32>
    %101 = arith.addf %100, %99 : vector<8x384xf32>
    %102 = arith.divf %100, %101 : vector<8x384xf32>
    %103 = vector.extract_strided_slice %96 {offsets = [0, 384], sizes = [8, 128], strides = [1, 1]} : vector<8x512xf32> to vector<8x128xf32>
    %104 = math.tanh %103 : vector<8x128xf32>
    %105 = vector.extract_strided_slice %102 {offsets = [0, 128], sizes = [8, 128], strides = [1, 1]} : vector<8x384xf32> to vector<8x128xf32>
    %106 = arith.mulf %105, %83 : vector<8x128xf32>
    %107 = vector.extract_strided_slice %102 {offsets = [0, 0], sizes = [8, 128], strides = [1, 1]} : vector<8x384xf32> to vector<8x128xf32>
    %108 = arith.mulf %107, %104 : vector<8x128xf32>
    %109 = arith.addf %106, %108 : vector<8x128xf32>
    %110 = vector.extract_strided_slice %102 {offsets = [0, 256], sizes = [8, 128], strides = [1, 1]} : vector<8x384xf32> to vector<8x128xf32>
    %111 = math.tanh %109 : vector<8x128xf32>
    %112 = arith.mulf %110, %111 : vector<8x128xf32>
    %113 = arith.index_cast %c3_i32 : i32 to index
    %c0_36 = arith.constant 0 : index
    %c0_37 = arith.constant 0 : index
    %114 = vector.load %arg5[%113, %c0_36, %c0_37] : memref<8x8x128xf32, #tpu.memory_space<vmem>>, vector<1x8x128xf32>
    %115 = vector.shape_cast %114 : vector<1x8x128xf32> to vector<8x128xf32>
    %116 = vector.shape_cast %112 : vector<8x128xf32> to vector<1x8x128xf32>
    tpu.vector_store %arg5[%113, %c0_36, %c0_37], %116 {strides = array<i32>} : memref<8x8x128xf32, #tpu.memory_space<vmem>>, vector<1x8x128xf32>,
    %c4_i32 = arith.constant 4 : i32
    %c8_i32_38 = arith.constant 8 : i32
    %117 = arith.muli %c4_i32, %c8_i32_38 : i32
    %118 = tpu.assume_multiple %117, 8 : i32
    %119 = arith.index_cast %118 : i32 to index
    %c0_39 = arith.constant 0 : index
    %120 = vector.load %arg10[%119, %c0_39] : memref<64x512xf32, #tpu.memory_space<vmem>>, vector<8x512xf32>
    %cst_40 = arith.constant dense<0.000000e+00> : vector<8x512xf32>
    %121 = tpu.matmul %112, %10, %cst_40 {dimension_numbers = #tpu.dot_dimension_numbers<[1], [0], [0], [1], [0, 0, 1, 1], [], []>} : vector<8x128xf32>, vector<128x512xf32>, vector<8x512xf32> -> vector<8x512xf32>
    %122 = arith.addf %120, %121 : vector<8x512xf32>
    %123 = vector.extract_strided_slice %122 {offsets = [0, 0], sizes = [8, 384], strides = [1, 1]} : vector<8x512xf32> to vector<8x384xf32>
    %124 = arith.negf %123 : vector<8x384xf32>
    %125 = math.exp %124 : vector<8x384xf32>
    %cst_41 = arith.constant 1.000000e+00 : f32
    %126 = vector.broadcast %cst_41 : f32 to vector<8x384xf32>
    %127 = arith.addf %126, %125 : vector<8x384xf32>
    %128 = arith.divf %126, %127 : vector<8x384xf32>
    %129 = vector.extract_strided_slice %122 {offsets = [0, 384], sizes = [8, 128], strides = [1, 1]} : vector<8x512xf32> to vector<8x128xf32>
    %130 = math.tanh %129 : vector<8x128xf32>
    %131 = vector.extract_strided_slice %128 {offsets = [0, 128], sizes = [8, 128], strides = [1, 1]} : vector<8x384xf32> to vector<8x128xf32>
    %132 = arith.mulf %131, %109 : vector<8x128xf32>
    %133 = vector.extract_strided_slice %128 {offsets = [0, 0], sizes = [8, 128], strides = [1, 1]} : vector<8x384xf32> to vector<8x128xf32>
    %134 = arith.mulf %133, %130 : vector<8x128xf32>
    %135 = arith.addf %132, %134 : vector<8x128xf32>
    %136 = vector.extract_strided_slice %128 {offsets = [0, 256], sizes = [8, 128], strides = [1, 1]} : vector<8x384xf32> to vector<8x128xf32>
    %137 = math.tanh %135 : vector<8x128xf32>
    %138 = arith.mulf %136, %137 : vector<8x128xf32>
    %139 = arith.index_cast %c4_i32 : i32 to index
    %c0_42 = arith.constant 0 : index
    %c0_43 = arith.constant 0 : index
    %140 = vector.load %arg5[%139, %c0_42, %c0_43] : memref<8x8x128xf32, #tpu.memory_space<vmem>>, vector<1x8x128xf32>
    %141 = vector.shape_cast %140 : vector<1x8x128xf32> to vector<8x128xf32>
    %142 = vector.shape_cast %138 : vector<8x128xf32> to vector<1x8x128xf32>
    tpu.vector_store %arg5[%139, %c0_42, %c0_43], %142 {strides = array<i32>} : memref<8x8x128xf32, #tpu.memory_space<vmem>>, vector<1x8x128xf32>,
    %c5_i32 = arith.constant 5 : i32
    %c8_i32_44 = arith.constant 8 : i32
    %143 = arith.muli %c5_i32, %c8_i32_44 : i32
    %144 = tpu.assume_multiple %143, 8 : i32
    %145 = arith.index_cast %144 : i32 to index
    %c0_45 = arith.constant 0 : index
    %146 = vector.load %arg10[%145, %c0_45] : memref<64x512xf32, #tpu.memory_space<vmem>>, vector<8x512xf32>
    %cst_46 = arith.constant dense<0.000000e+00> : vector<8x512xf32>
    %147 = tpu.matmul %138, %10, %cst_46 {dimension_numbers = #tpu.dot_dimension_numbers<[1], [0], [0], [1], [0, 0, 1, 1], [], []>} : vector<8x128xf32>, vector<128x512xf32>, vector<8x512xf32> -> vector<8x512xf32>
    %148 = arith.addf %146, %147 : vector<8x512xf32>
    %149 = vector.extract_strided_slice %148 {offsets = [0, 0], sizes = [8, 384], strides = [1, 1]} : vector<8x512xf32> to vector<8x384xf32>
    %150 = arith.negf %149 : vector<8x384xf32>
    %151 = math.exp %150 : vector<8x384xf32>
    %cst_47 = arith.constant 1.000000e+00 : f32
    %152 = vector.broadcast %cst_47 : f32 to vector<8x384xf32>
    %153 = arith.addf %152, %151 : vector<8x384xf32>
    %154 = arith.divf %152, %153 : vector<8x384xf32>
    %155 = vector.extract_strided_slice %148 {offsets = [0, 384], sizes = [8, 128], strides = [1, 1]} : vector<8x512xf32> to vector<8x128xf32>
    %156 = math.tanh %155 : vector<8x128xf32>
    %157 = vector.extract_strided_slice %154 {offsets = [0, 128], sizes = [8, 128], strides = [1, 1]} : vector<8x384xf32> to vector<8x128xf32>
    %158 = arith.mulf %157, %135 : vector<8x128xf32>
    %159 = vector.extract_strided_slice %154 {offsets = [0, 0], sizes = [8, 128], strides = [1, 1]} : vector<8x384xf32> to vector<8x128xf32>
    %160 = arith.mulf %159, %156 : vector<8x128xf32>
    %161 = arith.addf %158, %160 : vector<8x128xf32>
    %162 = vector.extract_strided_slice %154 {offsets = [0, 256], sizes = [8, 128], strides = [1, 1]} : vector<8x384xf32> to vector<8x128xf32>
    %163 = math.tanh %161 : vector<8x128xf32>
    %164 = arith.mulf %162, %163 : vector<8x128xf32>
    %165 = arith.index_cast %c5_i32 : i32 to index
    %c0_48 = arith.constant 0 : index
    %c0_49 = arith.constant 0 : index
    %166 = vector.load %arg5[%165, %c0_48, %c0_49] : memref<8x8x128xf32, #tpu.memory_space<vmem>>, vector<1x8x128xf32>
    %167 = vector.shape_cast %166 : vector<1x8x128xf32> to vector<8x128xf32>
    %168 = vector.shape_cast %164 : vector<8x128xf32> to vector<1x8x128xf32>
    tpu.vector_store %arg5[%165, %c0_48, %c0_49], %168 {strides = array<i32>} : memref<8x8x128xf32, #tpu.memory_space<vmem>>, vector<1x8x128xf32>,
    %c6_i32 = arith.constant 6 : i32
    %c8_i32_50 = arith.constant 8 : i32
    %169 = arith.muli %c6_i32, %c8_i32_50 : i32
    %170 = tpu.assume_multiple %169, 8 : i32
    %171 = arith.index_cast %170 : i32 to index
    %c0_51 = arith.constant 0 : index
    %172 = vector.load %arg10[%171, %c0_51] : memref<64x512xf32, #tpu.memory_space<vmem>>, vector<8x512xf32>
    %cst_52 = arith.constant dense<0.000000e+00> : vector<8x512xf32>
    %173 = tpu.matmul %164, %10, %cst_52 {dimension_numbers = #tpu.dot_dimension_numbers<[1], [0], [0], [1], [0, 0, 1, 1], [], []>} : vector<8x128xf32>, vector<128x512xf32>, vector<8x512xf32> -> vector<8x512xf32>
    %174 = arith.addf %172, %173 : vector<8x512xf32>
    %175 = vector.extract_strided_slice %174 {offsets = [0, 0], sizes = [8, 384], strides = [1, 1]} : vector<8x512xf32> to vector<8x384xf32>
    %176 = arith.negf %175 : vector<8x384xf32>
    %177 = math.exp %176 : vector<8x384xf32>
    %cst_53 = arith.constant 1.000000e+00 : f32
    %178 = vector.broadcast %cst_53 : f32 to vector<8x384xf32>
    %179 = arith.addf %178, %177 : vector<8x384xf32>
    %180 = arith.divf %178, %179 : vector<8x384xf32>
    %181 = vector.extract_strided_slice %174 {offsets = [0, 384], sizes = [8, 128], strides = [1, 1]} : vector<8x512xf32> to vector<8x128xf32>
    %182 = math.tanh %181 : vector<8x128xf32>
    %183 = vector.extract_strided_slice %180 {offsets = [0, 128], sizes = [8, 128], strides = [1, 1]} : vector<8x384xf32> to vector<8x128xf32>
    %184 = arith.mulf %183, %161 : vector<8x128xf32>
    %185 = vector.extract_strided_slice %180 {offsets = [0, 0], sizes = [8, 128], strides = [1, 1]} : vector<8x384xf32> to vector<8x128xf32>
    %186 = arith.mulf %185, %182 : vector<8x128xf32>
    %187 = arith.addf %184, %186 : vector<8x128xf32>
    %188 = vector.extract_strided_slice %180 {offsets = [0, 256], sizes = [8, 128], strides = [1, 1]} : vector<8x384xf32> to vector<8x128xf32>
    %189 = math.tanh %187 : vector<8x128xf32>
    %190 = arith.mulf %188, %189 : vector<8x128xf32>
    %191 = arith.index_cast %c6_i32 : i32 to index
    %c0_54 = arith.constant 0 : index
    %c0_55 = arith.constant 0 : index
    %192 = vector.load %arg5[%191, %c0_54, %c0_55] : memref<8x8x128xf32, #tpu.memory_space<vmem>>, vector<1x8x128xf32>
    %193 = vector.shape_cast %192 : vector<1x8x128xf32> to vector<8x128xf32>
    %194 = vector.shape_cast %190 : vector<8x128xf32> to vector<1x8x128xf32>
    tpu.vector_store %arg5[%191, %c0_54, %c0_55], %194 {strides = array<i32>} : memref<8x8x128xf32, #tpu.memory_space<vmem>>, vector<1x8x128xf32>,
    %c7_i32 = arith.constant 7 : i32
    %c8_i32_56 = arith.constant 8 : i32
    %195 = arith.muli %c7_i32, %c8_i32_56 : i32
    %196 = tpu.assume_multiple %195, 8 : i32
    %197 = arith.index_cast %196 : i32 to index
    %c0_57 = arith.constant 0 : index
    %198 = vector.load %arg10[%197, %c0_57] : memref<64x512xf32, #tpu.memory_space<vmem>>, vector<8x512xf32>
    %cst_58 = arith.constant dense<0.000000e+00> : vector<8x512xf32>
    %199 = tpu.matmul %190, %10, %cst_58 {dimension_numbers = #tpu.dot_dimension_numbers<[1], [0], [0], [1], [0, 0, 1, 1], [], []>} : vector<8x128xf32>, vector<128x512xf32>, vector<8x512xf32> -> vector<8x512xf32>
    %200 = arith.addf %198, %199 : vector<8x512xf32>
    %201 = vector.extract_strided_slice %200 {offsets = [0, 0], sizes = [8, 384], strides = [1, 1]} : vector<8x512xf32> to vector<8x384xf32>
    %202 = arith.negf %201 : vector<8x384xf32>
    %203 = math.exp %202 : vector<8x384xf32>
    %cst_59 = arith.constant 1.000000e+00 : f32
    %204 = vector.broadcast %cst_59 : f32 to vector<8x384xf32>
    %205 = arith.addf %204, %203 : vector<8x384xf32>
    %206 = arith.divf %204, %205 : vector<8x384xf32>
    %207 = vector.extract_strided_slice %200 {offsets = [0, 384], sizes = [8, 128], strides = [1, 1]} : vector<8x512xf32> to vector<8x128xf32>
    %208 = math.tanh %207 : vector<8x128xf32>
    %209 = vector.extract_strided_slice %206 {offsets = [0, 128], sizes = [8, 128], strides = [1, 1]} : vector<8x384xf32> to vector<8x128xf32>
    %210 = arith.mulf %209, %187 : vector<8x128xf32>
    %211 = vector.extract_strided_slice %206 {offsets = [0, 0], sizes = [8, 128], strides = [1, 1]} : vector<8x384xf32> to vector<8x128xf32>
    %212 = arith.mulf %211, %208 : vector<8x128xf32>
    %213 = arith.addf %210, %212 : vector<8x128xf32>
    %214 = vector.extract_strided_slice %206 {offsets = [0, 256], sizes = [8, 128], strides = [1, 1]} : vector<8x384xf32> to vector<8x128xf32>
    %215 = math.tanh %213 : vector<8x128xf32>
    %216 = arith.mulf %214, %215 : vector<8x128xf32>
    %217 = arith.index_cast %c7_i32 : i32 to index
    %c0_60 = arith.constant 0 : index
    %c0_61 = arith.constant 0 : index
    %218 = vector.load %arg5[%217, %c0_60, %c0_61] : memref<8x8x128xf32, #tpu.memory_space<vmem>>, vector<1x8x128xf32>
    %219 = vector.shape_cast %218 : vector<1x8x128xf32> to vector<8x128xf32>
    %220 = vector.shape_cast %216 : vector<8x128xf32> to vector<1x8x128xf32>
    tpu.vector_store %arg5[%217, %c0_60, %c0_61], %220 {strides = array<i32>} : memref<8x8x128xf32, #tpu.memory_space<vmem>>, vector<1x8x128xf32>,
    %c8_i32_62 = arith.constant 8 : i32
    %c0_63 = arith.constant 0 : index
    %c0_64 = arith.constant 0 : index
    %221 = vector.load %arg8[%c0_63, %c0_64] : memref<8x128xf32, #tpu.memory_space<vmem>>, vector<8x128xf32>
    tpu.vector_store %arg8[%c0_63, %c0_64], %216 {strides = array<i32>} : memref<8x128xf32, #tpu.memory_space<vmem>>, vector<8x128xf32>,
    %c0_65 = arith.constant 0 : index
    %c0_66 = arith.constant 0 : index
    %222 = vector.load %arg9[%c0_65, %c0_66] : memref<8x128xf32, #tpu.memory_space<vmem>>, vector<8x128xf32>
    tpu.vector_store %arg9[%c0_65, %c0_66], %213 {strides = array<i32>} : memref<8x128xf32, #tpu.memory_space<vmem>>, vector<8x128xf32>,
    %c0_i32_67 = arith.constant 0 : i32
    %223 = arith.cmpi eq, %arg0, %c0_i32_67 : i32
    %224 = arith.extui %223 : i1 to i32
    %c0_i32_68 = arith.constant 0 : i32
    %225 = arith.cmpi ne, %224, %c0_i32_68 : i32
    scf.if %225 {
      %c0_69 = arith.constant 0 : index
      %c0_70 = arith.constant 0 : index
      %c0_71 = arith.constant 0 : index
      %226 = vector.load %arg6[%c0_69, %c0_70, %c0_71] : memref<1x8x128xf32, #tpu.memory_space<vmem>>, vector<1x8x128xf32>
      %227 = vector.shape_cast %226 : vector<1x8x128xf32> to vector<8x128xf32>
      %228 = vector.shape_cast %216 : vector<8x128xf32> to vector<1x8x128xf32>
      tpu.vector_store %arg6[%c0_69, %c0_70, %c0_71], %228 {strides = array<i32>} : memref<1x8x128xf32, #tpu.memory_space<vmem>>, vector<1x8x128xf32>,
      %c0_72 = arith.constant 0 : index
      %c0_73 = arith.constant 0 : index
      %c0_74 = arith.constant 0 : index
      %229 = vector.load %arg7[%c0_72, %c0_73, %c0_74] : memref<1x8x128xf32, #tpu.memory_space<vmem>>, vector<1x8x128xf32>
      %230 = vector.shape_cast %229 : vector<1x8x128xf32> to vector<8x128xf32>
      %231 = vector.shape_cast %213 : vector<8x128xf32> to vector<1x8x128xf32>
      tpu.vector_store %arg7[%c0_72, %c0_73, %c0_74], %231 {strides = array<i32>} : memref<1x8x128xf32, #tpu.memory_space<vmem>>, vector<1x8x128xf32>,
    } else {
    }
    return
  }
  func.func @transform_0(%arg0: i32) -> (i32, i32) {
    %c0_i32 = arith.constant 0 : i32
    %c0_i32_0 = arith.constant 0 : i32
    return %arg0, %c0_i32 : i32, i32
  }
  func.func @transform_1(%arg0: i32) -> (i32, i32) {
    %c0_i32 = arith.constant 0 : i32
    %c0_i32_0 = arith.constant 0 : i32
    %c0_i32_1 = arith.constant 0 : i32
    return %c0_i32, %c0_i32_0 : i32, i32
  }
  func.func @transform_2(%arg0: i32) -> (i32, i32) {
    %c0_i32 = arith.constant 0 : i32
    %c0_i32_0 = arith.constant 0 : i32
    %c0_i32_1 = arith.constant 0 : i32
    return %c0_i32, %c0_i32_0 : i32, i32
  }
  func.func @transform_3(%arg0: i32) -> (i32, i32) {
    %c0_i32 = arith.constant 0 : i32
    %c0_i32_0 = arith.constant 0 : i32
    %c0_i32_1 = arith.constant 0 : i32
    return %c0_i32, %c0_i32_0 : i32, i32
  }
  func.func @transform_4(%arg0: i32) -> (i32, i32, i32) {
    %c0_i32 = arith.constant 0 : i32
    %c0_i32_0 = arith.constant 0 : i32
    %c0_i32_1 = arith.constant 0 : i32
    return %arg0, %c0_i32, %c0_i32_0 : i32, i32, i32
  }
  func.func @transform_5(%arg0: i32) -> (i32, i32, i32) {
    %c0_i32 = arith.constant 0 : i32
    %c0_i32_0 = arith.constant 0 : i32
    %c0_i32_1 = arith.constant 0 : i32
    %c0_i32_2 = arith.constant 0 : i32
    return %c0_i32, %c0_i32_0, %c0_i32_1 : i32, i32, i32
  }
  func.func @transform_6(%arg0: i32) -> (i32, i32, i32) {
    %c0_i32 = arith.constant 0 : i32
    %c0_i32_0 = arith.constant 0 : i32
    %c0_i32_1 = arith.constant 0 : i32
    %c0_i32_2 = arith.constant 0 : i32
    return %c0_i32, %c0_i32_0, %c0_i32_1 : i32, i32, i32
  }
}

</mosaic_0001>

<llo_original>
// kernel: tpu_custom_call.1
$region0: #{tpu_custom_call.1}
  #allocation0 [shape = 'u32[]', space=smem, size = 0x4, offset = 0x4, fixed_abs, tag = 'smem constant byte address 0x4 - core index']
  #allocation1 [shape = 'u32[144,128]{1,0:T(1,128)}', space=vmem, size = 0x12000, scoped, tag = 'internal scratch']
  #allocation2 [shape = 'f32[8,128]{1,0:T(8,128)}', space=vmem, size = 0x1000, scoped, tag = 'scratch operand']
  #allocation3 [shape = 'f32[8,128]{1,0:T(8,128)}', space=vmem, size = 0x1000, scoped, tag = 'scratch operand']
  #allocation4 [shape = 'f32[64,512]{1,0:T(8,128)}', space=vmem, size = 0x20000, scoped, tag = 'scratch operand']
  %s0 = inlined_call_operand.vmem [shape: f32[64,16], index: 0, kind: input, shape index: {}]
  %s1 = inlined_call_operand.vmem [shape: f32[16,512], index: 1, kind: input, shape index: {}]
  %s2 = inlined_call_operand.hbm [shape: f32[128,512], index: 2, kind: input, shape index: {}]
  %s3 = inlined_call_operand.vmem [shape: f32[1,512], index: 3, kind: input, shape index: {}]
  %s4 = inlined_call_operand.hbm [shape: f32[8,8,128], index: 4, kind: output, shape index: {0}]
  %s5 = inlined_call_operand.hbm [shape: f32[1,8,128], index: 5, kind: output, shape index: {1}]
  %s6 = inlined_call_operand.hbm [shape: f32[1,8,128], index: 6, kind: output, shape index: {2}]
  %7 = xla_tuple %s4, %s5, %s6
  %s8 = sld [smem:[#allocation0]]
  $region54: #{tpu_custom_call.1} parent=0
    _
  %s10 = ssub.s32 1, %s8
  %s11 = scalar_select 0, %s10, %s8
  $region1: #{tpu_custom_call.1} parent=0
    #allocation5 [shape = 'u8[262144]{0}', space=vmem, size = 0x40000, scoped, tag = 'input window, operand 2, single buffered']
    #allocation6 [shape = 's32[1]{0}', space=sflag, size = 0x4, scoped, tag = 'scoped memory for tpu_custom_call.1']
    #allocation7 [shape = 's32[1]{0}', space=sflag, size = 0x4, scoped, tag = 'scoped memory for tpu_custom_call.1']
    #allocation8 [shape = 'u8[32768]{0}', space=vmem, size = 0x8000, scoped, tag = 'output window, operand 0, single buffered']
    #allocation9 [shape = 'u8[4096]{0}', space=vmem, size = 0x1000, scoped, tag = 'output window, operand 1, single buffered']
    #allocation10 [shape = 's32[1]{0}', space=sflag, size = 0x4, scoped, tag = 'scoped memory for tpu_custom_call.1']
    #allocation11 [shape = 'u8[4096]{0}', space=vmem, size = 0x1000, scoped, tag = 'output window, operand 2, single buffered']
    %12 = vsyncpa [#allocation6], 0
    %13 = vsyncpa [#allocation7], 0
    %14 = vsyncpa [#allocation10], 0
    // Predicated region
    $region2: #{tpu_custom_call.1} parent=1 // pred_check
      _
    $region3: #{tpu_custom_call.1} parent=1 // pred_check_branch
      %16 = sbr.rel (0) target = $region5
    $region4: #{tpu_custom_call.1} parent=1 // pred_region
      _
    $region5: #{tpu_custom_call.1} parent=1 // pred_fallthru
      _
    // Predicated region
    $region6: #{tpu_custom_call.1} parent=1 // pred_check
      _
    $region7: #{tpu_custom_call.1} parent=1 // pred_check_branch
      %18 = sbr.rel (0) target = $region9
    $region8: #{tpu_custom_call.1} parent=1 // pred_region
      _
    $region9: #{tpu_custom_call.1} parent=1 // pred_fallthru
      _
    // Predicated region
    $region10: #{tpu_custom_call.1} parent=1 // pred_check
      _
    $region11: #{tpu_custom_call.1} parent=1 // pred_check_branch
      %20 = sbr.rel (0) target = $region13
    $region12: #{tpu_custom_call.1} parent=1 // pred_region
      %s22 = ssub.s32 8192, 8192
      %23 = vsyncadd [#allocation6], %s22
      %s24 = sshll.u32 [#allocation5], 4
      %s25 = int_to_ptr.vmem [resolvable:$true] %s24
      %30 = dma.hbm_to_vmem [thread:$0]  %s2, 8192, %s25, [#allocation6], 512, 512, 32
    $region13: #{tpu_custom_call.1} parent=1 // pred_fallthru
      _
    // Predicated region
    $region14: #{tpu_custom_call.1} parent=1 // pred_check
      _
    $region15: #{tpu_custom_call.1} parent=1 // pred_check_branch
      %32 = sbr.rel (0) target = $region17
    $region16: #{tpu_custom_call.1} parent=1 // pred_region
      _
    $region17: #{tpu_custom_call.1} parent=1 // pred_fallthru
      _
    // Predicated region
    $region18: #{tpu_custom_call.1} parent=1 // pred_check
      _
    $region19: #{tpu_custom_call.1} parent=1 // pred_check_branch
      %34 = sbr.rel (0) target = $region21
    $region20: #{tpu_custom_call.1} parent=1 // pred_region
      %35 = dma.done [#allocation6], 8192
    $region21: #{tpu_custom_call.1} parent=1 // pred_fallthru
      _
    %p36 = scmp.eq.s32.totalorder 0, 0
    // Predicated region
    $region22: #{tpu_custom_call.1} parent=1 // pred_check
      %p37 = pneg %p36
    $region23: #{tpu_custom_call.1} parent=1 // pred_check_branch
      %39 = sbr.rel (%p37) target = $region25
    $region24: #{tpu_custom_call.1} parent=1 // pred_region
      %40 = vst [vmem:[#allocation2] sm:$0xff] 0.0
      %41 = vst [vmem:[#allocation3] sm:$0xff] 0.0
    $region25: #{tpu_custom_call.1} parent=1 // pred_fallthru
      _
    %v42 = vld [vmem:[%s0] sm:$0xff]
    %v43 = vld [vmem:[%s0 + $0x8] sm:$0xff]
    %v44 = vld [vmem:[%s0 + $0x10] sm:$0xff]
    %v45 = vld [vmem:[%s0 + $0x18] sm:$0xff]
    %v46 = vld [vmem:[%s0 + $0x20] sm:$0xff]
    %v47 = vld [vmem:[%s0 + $0x28] sm:$0xff]
    %v48 = vld [vmem:[%s0 + $0x30] sm:$0xff]
    %v49 = vld [vmem:[%s0 + $0x38] sm:$0xff]
    %v50 = vld [vmem:[%s1] sm:$0xff]
    %v51 = vld [vmem:[%s1 + $0x8] sm:$0xff]
    %v52 = vld [vmem:[%s1 + $0x10] sm:$0xff]
    %v53 = vld [vmem:[%s1 + $0x18] sm:$0xff]
    %v54 = vld [vmem:[%s1 + $0x20] sm:$0xff]
    %v55 = vld [vmem:[%s1 + $0x28] sm:$0xff]
    %v56 = vld [vmem:[%s1 + $0x30] sm:$0xff]
    %v57 = vld [vmem:[%s1 + $0x38] sm:$0xff]
    %v58 = vld [vmem:[%s3] sm:$0xf]
    %v60 = vlaneseq
    %v61 = vshrl.u32 %v60, 7
    %v62 = vsub.s32 0, %v61
    %v63 = vrot.slane %v58, %v62
    %v64 = vlaneseq
    %v65 = vshrl.u32 %v64, 7
    %v66 = vsub.s32 1, %v65
    %v67 = vrot.slane %v58, %v66
    %v68 = vlaneseq
    %v69 = vshrl.u32 %v68, 7
    %v70 = vsub.s32 2, %v69
    %v71 = vrot.slane %v58, %v70
    %v72 = vlaneseq
    %v73 = vshrl.u32 %v72, 7
    %v74 = vsub.s32 3, %v73
    %v75 = vrot.slane %v58, %v74
    %vm80 = vcmask 130048
    %v82 = vsel %vm80, %v42, 0
    %v85 = vsel %vm80, %v43, 0
    %v88 = vsel %vm80, %v44, 0
    %v91 = vsel %vm80, %v45, 0
    %v94 = vsel %vm80, %v46, 0
    %v97 = vsel %vm80, %v47, 0
    %v100 = vsel %vm80, %v48, 0
    %v103 = vsel %vm80, %v49, 0
    %105 = vmatprep.subr.mxu0 %v51
    %106 = vmatpush1.msra.mxu0 %v50
    %107 = vmatprep.subr.mxu0 %v55
    %108 = vmatpush1.msra.mxu0 %v54
    %109 = vmatprep.subr.mxu0 0.0
    %110 = vmatpush1.msra.mxu0 0.0
    %111 = vmatprep.subr.mxu0 0.0
    %112 = vmatpush1.msra.mxu0 0.0
    %113 = vmatprep.subr.mxu0 0.0
    %114 = vmatpush1.msra.mxu0 0.0
    %115 = vmatprep.subr.mxu0 0.0
    %116 = vmatpush1.msra.mxu0 0.0
    %117 = vmatprep.subr.mxu0 0.0
    %118 = vmatpush1.msra.mxu0 0.0
    %119 = vmatprep.subr.mxu0 0.0
    %120 = vmatpush1.msra.mxu0 0.0
    %121 = vmatprep.subr.mxu0 0.0
    %122 = vmatpush1.msra.mxu0 0.0
    %123 = vmatprep.subr.mxu0 0.0
    %124 = vmatpush1.msra.mxu0 0.0
    %125 = vmatprep.subr.mxu0 0.0
    %126 = vmatpush1.msra.mxu0 0.0
    %127 = vmatprep.subr.mxu0 0.0
    %128 = vmatpush1.msra.mxu0 0.0
    %129 = vmatprep.subr.mxu0 0.0
    %130 = vmatpush1.msra.mxu0 0.0
    %131 = vmatprep.subr.mxu0 0.0
    %132 = vmatpush1.msra.mxu0 0.0
    %133 = vmatprep.subr.mxu0 0.0
    %134 = vmatpush1.msra.mxu0 0.0
    %135 = vmatprep.subr.mxu0 0.0
    %136 = vmatpush1.msra.mxu0 0.0
    %137 = vmatprep.subr.mxu0 0.0
    %138 = vmatpush1.msra.mxu0 0.0
    %139 = vmatprep.subr.mxu0 0.0
    %140 = vmatpush1.msra.mxu0 0.0
    %141 = vmatprep.subr.mxu0 0.0
    %142 = vmatpush1.msra.mxu0 0.0
    %143 = vmatprep.subr.mxu0 0.0
    %144 = vmatpush1.msra.mxu0 0.0
    %145 = vmatprep.subr.mxu0 0.0
    %146 = vmatpush1.msra.mxu0 0.0
    %147 = vmatprep.subr.mxu0 0.0
    %148 = vmatpush1.msra.mxu0 0.0
    %149 = vmatprep.subr.mxu0 0.0
    %150 = vmatpush1.msra.mxu0 0.0
    %151 = vmatprep.subr.mxu0 0.0
    %152 = vmatpush1.msra.mxu0 0.0
    %153 = vmatprep.subr.mxu0 0.0
    %154 = vmatpush1.msra.mxu0 0.0
    %155 = vmatprep.subr.mxu0 0.0
    %156 = vmatpush1.msra.mxu0 0.0
    %157 = vmatprep.subr.mxu0 0.0
    %158 = vmatpush1.msra.mxu0 0.0
    %159 = vmatprep.subr.mxu0 0.0
    %160 = vmatpush1.msra.mxu0 0.0
    %161 = vmatprep.subr.mxu0 0.0
    %162 = vmatpush1.msra.mxu0 0.0
    %163 = vmatprep.subr.mxu0 0.0
    %164 = vmatpush1.msra.mxu0 0.0
    %165 = vmatprep.subr.mxu0 0.0
    %166 = vmatpush1.msra.mxu0 0.0
    %167 = vmatprep.subr.mxu0 0.0
    %168 = vmatpush1.msra.mxu0 0.0
    %169 = vmatprep.mubr.f32.mxu0 0.0
    %170 = vmatmul.mubr.f32.gmra.mrb[0].mxu0 %v82
    %v171 = vpop.f32.mrb[0].mxu0
    %v172 = vadd.f32 %v63, %v171
    %v173 = vpop.f32.mrb[0].mxu0
    %v174 = vadd.f32 %v67, %v173
    %175 = vmatprep.mubr.f32.mxu0 0.0
    %176 = vmatmul.mubr.f32.gmra.mrb[0].mxu0 %v85
    %v177 = vpop.f32.mrb[0].mxu0
    %v178 = vadd.f32 %v63, %v177
    %v179 = vpop.f32.mrb[0].mxu0
    %v180 = vadd.f32 %v67, %v179
    %181 = vmatprep.mubr.f32.mxu0 0.0
    %182 = vmatmul.mubr.f32.gmra.mrb[0].mxu0 %v88
    %v183 = vpop.f32.mrb[0].mxu0
    %v184 = vadd.f32 %v63, %v183
    %v185 = vpop.f32.mrb[0].mxu0
    %v186 = vadd.f32 %v67, %v185
    %187 = vmatprep.mubr.f32.mxu0 0.0
    %188 = vmatmul.mubr.f32.gmra.mrb[0].mxu0 %v91
    %v189 = vpop.f32.mrb[0].mxu0
    %v190 = vadd.f32 %v63, %v189
    %v191 = vpop.f32.mrb[0].mxu0
    %v192 = vadd.f32 %v67, %v191
    %193 = vmatprep.mubr.f32.mxu0 0.0
    %194 = vmatmul.mubr.f32.gmra.mrb[0].mxu0 %v94
    %v195 = vpop.f32.mrb[0].mxu0
    %v196 = vadd.f32 %v63, %v195
    %v197 = vpop.f32.mrb[0].mxu0
    %v198 = vadd.f32 %v67, %v197
    %199 = vmatprep.mubr.f32.mxu0 0.0
    %200 = vmatmul.mubr.f32.gmra.mrb[0].mxu0 %v97
    %v201 = vpop.f32.mrb[0].mxu0
    %v202 = vadd.f32 %v63, %v201
    %v203 = vpop.f32.mrb[0].mxu0
    %v204 = vadd.f32 %v67, %v203
    %205 = vmatprep.mubr.f32.mxu0 0.0
    %206 = vmatmul.mubr.f32.gmra.mrb[0].mxu0 %v100
    %v207 = vpop.f32.mrb[0].mxu0
    %v208 = vadd.f32 %v63, %v207
    %v209 = vpop.f32.mrb[0].mxu0
    %v210 = vadd.f32 %v67, %v209
    %211 = vmatprep.mubr.f32.mxu0 0.0
    %212 = vmatmul.mubr.f32.gmra.mrb[0].mxu0 %v103
    %v213 = vpop.f32.mrb[0].mxu0
    %v214 = vadd.f32 %v63, %v213
    %v215 = vpop.f32.mrb[0].mxu0
    %v216 = vadd.f32 %v67, %v215
    %217 = vdwg.mxu0
    %218 = vmatprep.subr.mxu0 %v53
    %219 = vmatpush1.msra.mxu0 %v52
    %220 = vmatprep.subr.mxu0 %v57
    %221 = vmatpush1.msra.mxu0 %v56
    %222 = vmatprep.subr.mxu0 0.0
    %223 = vmatpush1.msra.mxu0 0.0
    %224 = vmatprep.subr.mxu0 0.0
    %225 = vmatpush1.msra.mxu0 0.0
    %226 = vmatprep.subr.mxu0 0.0
    %227 = vmatpush1.msra.mxu0 0.0
    %228 = vmatprep.subr.mxu0 0.0
    %229 = vmatpush1.msra.mxu0 0.0
    %230 = vmatprep.subr.mxu0 0.0
    %231 = vmatpush1.msra.mxu0 0.0
    %232 = vmatprep.subr.mxu0 0.0
    %233 = vmatpush1.msra.mxu0 0.0
    %234 = vmatprep.subr.mxu0 0.0
    %235 = vmatpush1.msra.mxu0 0.0
    %236 = vmatprep.subr.mxu0 0.0
    %237 = vmatpush1.msra.mxu0 0.0
    %238 = vmatprep.subr.mxu0 0.0
    %239 = vmatpush1.msra.mxu0 0.0
    %240 = vmatprep.subr.mxu0 0.0
    %241 = vmatpush1.msra.mxu0 0.0
    %242 = vmatprep.subr.mxu0 0.0
    %243 = vmatpush1.msra.mxu0 0.0
    %244 = vmatprep.subr.mxu0 0.0
    %245 = vmatpush1.msra.mxu0 0.0
    %246 = vmatprep.subr.mxu0 0.0
    %247 = vmatpush1.msra.mxu0 0.0
    %248 = vmatprep.subr.mxu0 0.0
    %249 = vmatpush1.msra.mxu0 0.0
    %250 = vmatprep.subr.mxu0 0.0
    %251 = vmatpush1.msra.mxu0 0.0
    %252 = vmatprep.subr.mxu0 0.0
    %253 = vmatpush1.msra.mxu0 0.0
    %254 = vmatprep.subr.mxu0 0.0
    %255 = vmatpush1.msra.mxu0 0.0
    %256 = vmatprep.subr.mxu0 0.0
    %257 = vmatpush1.msra.mxu0 0.0
    %258 = vmatprep.subr.mxu0 0.0
    %259 = vmatpush1.msra.mxu0 0.0
    %260 = vmatprep.subr.mxu0 0.0
    %261 = vmatpush1.msra.mxu0 0.0
    %262 = vmatprep.subr.mxu0 0.0
    %263 = vmatpush1.msra.mxu0 0.0
    %264 = vmatprep.subr.mxu0 0.0
    %265 = vmatpush1.msra.mxu0 0.0
    %266 = vmatprep.subr.mxu0 0.0
    %267 = vmatpush1.msra.mxu0 0.0
    %268 = vmatprep.subr.mxu0 0.0
    %269 = vmatpush1.msra.mxu0 0.0
    %270 = vmatprep.subr.mxu0 0.0
    %271 = vmatpush1.msra.mxu0 0.0
    %272 = vmatprep.subr.mxu0 0.0
    %273 = vmatpush1.msra.mxu0 0.0
    %274 = vmatprep.subr.mxu0 0.0
    %275 = vmatpush1.msra.mxu0 0.0
    %276 = vmatprep.subr.mxu0 0.0
    %277 = vmatpush1.msra.mxu0 0.0
    %278 = vmatprep.subr.mxu0 0.0
    %279 = vmatpush1.msra.mxu0 0.0
    %280 = vmatprep.subr.mxu0 0.0
    %281 = vmatpush1.msra.mxu0 0.0
    %282 = vmatprep.mubr.f32.mxu0 0.0
    %283 = vmatmul.mubr.f32.gmra.mrb[0].mxu0 %v82
    %v284 = vpop.f32.mrb[0].mxu0
    %v285 = vadd.f32 %v71, %v284
    %v286 = vpop.f32.mrb[0].mxu0
    %v287 = vadd.f32 %v75, %v286
    %288 = vmatprep.mubr.f32.mxu0 0.0
    %289 = vmatmul.mubr.f32.gmra.mrb[0].mxu0 %v85
    %v290 = vpop.f32.mrb[0].mxu0
    %v291 = vadd.f32 %v71, %v290
    %v292 = vpop.f32.mrb[0].mxu0
    %v293 = vadd.f32 %v75, %v292
    %294 = vmatprep.mubr.f32.mxu0 0.0
    %295 = vmatmul.mubr.f32.gmra.mrb[0].mxu0 %v88
    %v296 = vpop.f32.mrb[0].mxu0
    %v297 = vadd.f32 %v71, %v296
    %v298 = vpop.f32.mrb[0].mxu0
    %v299 = vadd.f32 %v75, %v298
    %300 = vmatprep.mubr.f32.mxu0 0.0
    %301 = vmatmul.mubr.f32.gmra.mrb[0].mxu0 %v91
    %v302 = vpop.f32.mrb[0].mxu0
    %v303 = vadd.f32 %v71, %v302
    %v304 = vpop.f32.mrb[0].mxu0
    %v305 = vadd.f32 %v75, %v304
    %306 = vmatprep.mubr.f32.mxu0 0.0
    %307 = vmatmul.mubr.f32.gmra.mrb[0].mxu0 %v94
    %v308 = vpop.f32.mrb[0].mxu0
    %v309 = vadd.f32 %v71, %v308
    %v310 = vpop.f32.mrb[0].mxu0
    %v311 = vadd.f32 %v75, %v310
    %312 = vmatprep.mubr.f32.mxu0 0.0
    %313 = vmatmul.mubr.f32.gmra.mrb[0].mxu0 %v97
    %v314 = vpop.f32.mrb[0].mxu0
    %v315 = vadd.f32 %v71, %v314
    %v316 = vpop.f32.mrb[0].mxu0
    %v317 = vadd.f32 %v75, %v316
    %318 = vmatprep.mubr.f32.mxu0 0.0
    %319 = vmatmul.mubr.f32.gmra.mrb[0].mxu0 %v100
    %v320 = vpop.f32.mrb[0].mxu0
    %v321 = vadd.f32 %v71, %v320
    %v322 = vpop.f32.mrb[0].mxu0
    %v323 = vadd.f32 %v75, %v322
    %324 = vmatprep.mubr.f32.mxu0 0.0
    %325 = vmatmul.mubr.f32.gmra.mrb[0].mxu0 %v103
    %v326 = vpop.f32.mrb[0].mxu0
    %v327 = vadd.f32 %v71, %v326
    %v328 = vpop.f32.mrb[0].mxu0
    %v329 = vadd.f32 %v75, %v328
    %330 = vdwg.mxu0
    %331 = vst [vmem:[#allocation4] sm:$0xff] %v172
    %332 = vst [vmem:[#allocation4 + $0x8] sm:$0xff] %v174
    %333 = vst [vmem:[#allocation4 + $0x10] sm:$0xff] %v285
    %334 = vst [vmem:[#allocation4 + $0x18] sm:$0xff] %v287
    %335 = vst [vmem:[#allocation4 + $0x20] sm:$0xff] %v178
    %336 = vst [vmem:[#allocation4 + $0x28] sm:$0xff] %v180
    %337 = vst [vmem:[#allocation4 + $0x30] sm:$0xff] %v291
    %338 = vst [vmem:[#allocation4 + $0x38] sm:$0xff] %v293
    %339 = vst [vmem:[#allocation4 + $0x40] sm:$0xff] %v184
    %340 = vst [vmem:[#allocation4 + $0x48] sm:$0xff] %v186
    %341 = vst [vmem:[#allocation4 + $0x50] sm:$0xff] %v297
    %342 = vst [vmem:[#allocation4 + $0x58] sm:$0xff] %v299
    %343 = vst [vmem:[#allocation4 + $0x60] sm:$0xff] %v190
    %344 = vst [vmem:[#allocation4 + $0x68] sm:$0xff] %v192
    %345 = vst [vmem:[#allocation4 + $0x70] sm:$0xff] %v303
    %346 = vst [vmem:[#allocation4 + $0x78] sm:$0xff] %v305
    %347 = vst [vmem:[#allocation4 + $0x80] sm:$0xff] %v196
    %348 = vst [vmem:[#allocation4 + $0x88] sm:$0xff] %v198
    %349 = vst [vmem:[#allocation4 + $0x90] sm:$0xff] %v309
    %350 = vst [vmem:[#allocation4 + $0x98] sm:$0xff] %v311
    %351 = vst [vmem:[#allocation4 + $0xa0] sm:$0xff] %v202
    %352 = vst [vmem:[#allocation4 + $0xa8] sm:$0xff] %v204
    %353 = vst [vmem:[#allocation4 + $0xb0] sm:$0xff] %v315
    %354 = vst [vmem:[#allocation4 + $0xb8] sm:$0xff] %v317
    %355 = vst [vmem:[#allocation4 + $0xc0] sm:$0xff] %v208
    %356 = vst [vmem:[#allocation4 + $0xc8] sm:$0xff] %v210
    %357 = vst [vmem:[#allocation4 + $0xd0] sm:$0xff] %v321
    %358 = vst [vmem:[#allocation4 + $0xd8] sm:$0xff] %v323
    %359 = vst [vmem:[#allocation4 + $0xe0] sm:$0xff] %v214
    %360 = vst [vmem:[#allocation4 + $0xe8] sm:$0xff] %v216
    %361 = vst [vmem:[#allocation4 + $0xf0] sm:$0xff] %v327
    %362 = vst [vmem:[#allocation4 + $0xf8] sm:$0xff] %v329
    %v363 = vld [vmem:[#allocation5] sm:$0xff]
    %v364 = vld [vmem:[#allocation5 + $0x8] sm:$0xff]
    %v365 = vld [vmem:[#allocation5 + $0x10] sm:$0xff]
    %v366 = vld [vmem:[#allocation5 + $0x18] sm:$0xff]
    %v367 = vld [vmem:[#allocation5 + $0x20] sm:$0xff]
    %v368 = vld [vmem:[#allocation5 + $0x28] sm:$0xff]
    %v369 = vld [vmem:[#allocation5 + $0x30] sm:$0xff]
    %v370 = vld [vmem:[#allocation5 + $0x38] sm:$0xff]
    %v371 = vld [vmem:[#allocation5 + $0x40] sm:$0xff]
    %v372 = vld [vmem:[#allocation5 + $0x48] sm:$0xff]
    %v373 = vld [vmem:[#allocation5 + $0x50] sm:$0xff]
    %v374 = vld [vmem:[#allocation5 + $0x58] sm:$0xff]
    %v375 = vld [vmem:[#allocation5 + $0x60] sm:$0xff]
    %v376 = vld [vmem:[#allocation5 + $0x68] sm:$0xff]
    %v377 = vld [vmem:[#allocation5 + $0x70] sm:$0xff]
    %v378 = vld [vmem:[#allocation5 + $0x78] sm:$0xff]
    %v379 = vld [vmem:[#allocation5 + $0x80] sm:$0xff]
    %v380 = vld [vmem:[#allocation5 + $0x88] sm:$0xff]
    %v381 = vld [vmem:[#allocation5 + $0x90] sm:$0xff]
    %v382 = vld [vmem:[#allocation5 + $0x98] sm:$0xff]
    %v383 = vld [vmem:[#allocation5 + $0xa0] sm:$0xff]
    %v384 = vld [vmem:[#allocation5 + $0xa8] sm:$0xff]
    %v385 = vld [vmem:[#allocation5 + $0xb0] sm:$0xff]
    %v386 = vld [vmem:[#allocation5 + $0xb8] sm:$0xff]
    %v387 = vld [vmem:[#allocation5 + $0xc0] sm:$0xff]
    %v388 = vld [vmem:[#allocation5 + $0xc8] sm:$0xff]
    %v389 = vld [vmem:[#allocation5 + $0xd0] sm:$0xff]
    %v390 = vld [vmem:[#allocation5 + $0xd8] sm:$0xff]
    %v391 = vld [vmem:[#allocation5 + $0xe0] sm:$0xff]
    %v392 = vld [vmem:[#allocation5 + $0xe8] sm:$0xff]
    %v393 = vld [vmem:[#allocation5 + $0xf0] sm:$0xff]
    %v394 = vld [vmem:[#allocation5 + $0xf8] sm:$0xff]
    %v395 = vld [vmem:[#allocation5 + $0x100] sm:$0xff]
    %v396 = vld [vmem:[#allocation5 + $0x108] sm:$0xff]
    %v397 = vld [vmem:[#allocation5 + $0x110] sm:$0xff]
    %v398 = vld [vmem:[#allocation5 + $0x118] sm:$0xff]
    %v399 = vld [vmem:[#allocation5 + $0x120] sm:$0xff]
    %v400 = vld [vmem:[#allocation5 + $0x128] sm:$0xff]
    %v401 = vld [vmem:[#allocation5 + $0x130] sm:$0xff]
    %v402 = vld [vmem:[#allocation5 + $0x138] sm:$0xff]
    %v403 = vld [vmem:[#allocation5 + $0x140] sm:$0xff]
    %v404 = vld [vmem:[#allocation5 + $0x148] sm:$0xff]
    %v405 = vld [vmem:[#allocation5 + $0x150] sm:$0xff]
    %v406 = vld [vmem:[#allocation5 + $0x158] sm:$0xff]
    %v407 = vld [vmem:[#allocation5 + $0x160] sm:$0xff]
    %v408 = vld [vmem:[#allocation5 + $0x168] sm:$0xff]
    %v409 = vld [vmem:[#allocation5 + $0x170] sm:$0xff]
    %v410 = vld [vmem:[#allocation5 + $0x178] sm:$0xff]
    %v411 = vld [vmem:[#allocation5 + $0x180] sm:$0xff]
    %v412 = vld [vmem:[#allocation5 + $0x188] sm:$0xff]
    %v413 = vld [vmem:[#allocation5 + $0x190] sm:$0xff]
    %v414 = vld [vmem:[#allocation5 + $0x198] sm:$0xff]
    %v415 = vld [vmem:[#allocation5 + $0x1a0] sm:$0xff]
    %v416 = vld [vmem:[#allocation5 + $0x1a8] sm:$0xff]
    %v417 = vld [vmem:[#allocation5 + $0x1b0] sm:$0xff]
    %v418 = vld [vmem:[#allocation5 + $0x1b8] sm:$0xff]
    %v419 = vld [vmem:[#allocation5 + $0x1c0] sm:$0xff]
    %v420 = vld [vmem:[#allocation5 + $0x1c8] sm:$0xff]
    %v421 = vld [vmem:[#allocation5 + $0x1d0] sm:$0xff]
    %v422 = vld [vmem:[#allocation5 + $0x1d8] sm:$0xff]
    %v423 = vld [vmem:[#allocation5 + $0x1e0] sm:$0xff]
    %v424 = vld [vmem:[#allocation5 + $0x1e8] sm:$0xff]
    %v425 = vld [vmem:[#allocation5 + $0x1f0] sm:$0xff]
    %v426 = vld [vmem:[#allocation5 + $0x1f8] sm:$0xff]
    %v427 = vld [vmem:[#allocation2] sm:$0xff]
    %v428 = vld [vmem:[#allocation3] sm:$0xff]
    %s429 = smul.u32 0, 4
    %s430 = smul.addr %s429, 8
    %s431 = scalar_lea.vmem [#allocation4], %s430
    %v432 = vld [vmem:[%s431] sm:$0xff]
    %v433 = vld [vmem:[%s431 + $0x8] sm:$0xff]
    %v434 = vld [vmem:[%s431 + $0x10] sm:$0xff]
    %v435 = vld [vmem:[%s431 + $0x18] sm:$0xff]
    %436 = vmatprep.subr.mxu0 %v364
    %437 = vmatpush1.msra.mxu0 %v363
    %438 = vmatprep.subr.mxu0 %v368
    %439 = vmatpush1.msra.mxu0 %v367
    %440 = vmatprep.subr.mxu0 %v372
    %441 = vmatpush1.msra.mxu0 %v371
    %442 = vmatprep.subr.mxu0 %v376
    %443 = vmatpush1.msra.mxu0 %v375
    %444 = vmatprep.subr.mxu0 %v380
    %445 = vmatpush1.msra.mxu0 %v379
    %446 = vmatprep.subr.mxu0 %v384
    %447 = vmatpush1.msra.mxu0 %v383
    %448 = vmatprep.subr.mxu0 %v388
    %449 = vmatpush1.msra.mxu0 %v387
    %450 = vmatprep.subr.mxu0 %v392
    %451 = vmatpush1.msra.mxu0 %v391
    %452 = vmatprep.subr.mxu0 %v396
    %453 = vmatpush1.msra.mxu0 %v395
    %454 = vmatprep.subr.mxu0 %v400
    %455 = vmatpush1.msra.mxu0 %v399
    %456 = vmatprep.subr.mxu0 %v404
    %457 = vmatpush1.msra.mxu0 %v403
    %458 = vmatprep.subr.mxu0 %v408
    %459 = vmatpush1.msra.mxu0 %v407
    %460 = vmatprep.subr.mxu0 %v412
    %461 = vmatpush1.msra.mxu0 %v411
    %462 = vmatprep.subr.mxu0 %v416
    %463 = vmatpush1.msra.mxu0 %v415
    %464 = vmatprep.subr.mxu0 %v420
    %465 = vmatpush1.msra.mxu0 %v419
    %466 = vmatprep.subr.mxu0 %v424
    %467 = vmatpush1.msra.mxu0 %v423
    %468 = vmatprep.subr.mxu0 0.0
    %469 = vmatpush1.msra.mxu0 0.0
    %470 = vmatprep.subr.mxu0 0.0
    %471 = vmatpush1.msra.mxu0 0.0
    %472 = vmatprep.subr.mxu0 0.0
    %473 = vmatpush1.msra.mxu0 0.0
    %474 = vmatprep.subr.mxu0 0.0
    %475 = vmatpush1.msra.mxu0 0.0
    %476 = vmatprep.subr.mxu0 0.0
    %477 = vmatpush1.msra.mxu0 0.0
    %478 = vmatprep.subr.mxu0 0.0
    %479 = vmatpush1.msra.mxu0 0.0
    %480 = vmatprep.subr.mxu0 0.0
    %481 = vmatpush1.msra.mxu0 0.0
    %482 = vmatprep.subr.mxu0 0.0
    %483 = vmatpush1.msra.mxu0 0.0
    %484 = vmatprep.subr.mxu0 0.0
    %485 = vmatpush1.msra.mxu0 0.0
    %486 = vmatprep.subr.mxu0 0.0
    %487 = vmatpush1.msra.mxu0 0.0
    %488 = vmatprep.subr.mxu0 0.0
    %489 = vmatpush1.msra.mxu0 0.0
    %490 = vmatprep.subr.mxu0 0.0
    %491 = vmatpush1.msra.mxu0 0.0
    %492 = vmatprep.subr.mxu0 0.0
    %493 = vmatpush1.msra.mxu0 0.0
    %494 = vmatprep.subr.mxu0 0.0
    %495 = vmatpush1.msra.mxu0 0.0
    %496 = vmatprep.subr.mxu0 0.0
    %497 = vmatpush1.msra.mxu0 0.0
    %498 = vmatprep.subr.mxu0 0.0
    %499 = vmatpush1.msra.mxu0 0.0
    %500 = vmatprep.mubr.f32.mxu0 0.0
    %501 = vmatmul.mubr.f32.gmra.mrb[0].mxu0 %v427
    %v502 = vpop.f32.mrb[0].mxu0
    %v503 = vadd.f32 0.0, %v502
    %v504 = vpop.f32.mrb[0].mxu0
    %v505 = vadd.f32 0.0, %v504
    %506 = vdwg.mxu0
    %507 = vmatprep.subr.mxu0 %v366
    %508 = vmatpush1.msra.mxu0 %v365
    %509 = vmatprep.subr.mxu0 %v370
    %510 = vmatpush1.msra.mxu0 %v369
    %511 = vmatprep.subr.mxu0 %v374
    %512 = vmatpush1.msra.mxu0 %v373
    %513 = vmatprep.subr.mxu0 %v378
    %514 = vmatpush1.msra.mxu0 %v377
    %515 = vmatprep.subr.mxu0 %v382
    %516 = vmatpush1.msra.mxu0 %v381
    %517 = vmatprep.subr.mxu0 %v386
    %518 = vmatpush1.msra.mxu0 %v385
    %519 = vmatprep.subr.mxu0 %v390
    %520 = vmatpush1.msra.mxu0 %v389
    %521 = vmatprep.subr.mxu0 %v394
    %522 = vmatpush1.msra.mxu0 %v393
    %523 = vmatprep.subr.mxu0 %v398
    %524 = vmatpush1.msra.mxu0 %v397
    %525 = vmatprep.subr.mxu0 %v402
    %526 = vmatpush1.msra.mxu0 %v401
    %527 = vmatprep.subr.mxu0 %v406
    %528 = vmatpush1.msra.mxu0 %v405
    %529 = vmatprep.subr.mxu0 %v410
    %530 = vmatpush1.msra.mxu0 %v409
    %531 = vmatprep.subr.mxu0 %v414
    %532 = vmatpush1.msra.mxu0 %v413
    %533 = vmatprep.subr.mxu0 %v418
    %534 = vmatpush1.msra.mxu0 %v417
    %535 = vmatprep.subr.mxu0 %v422
    %536 = vmatpush1.msra.mxu0 %v421
    %537 = vmatprep.subr.mxu0 %v426
    %538 = vmatpush1.msra.mxu0 %v425
    %539 = vmatprep.subr.mxu0 0.0
    %540 = vmatpush1.msra.mxu0 0.0
    %541 = vmatprep.subr.mxu0 0.0
    %542 = vmatpush1.msra.mxu0 0.0
    %543 = vmatprep.subr.mxu0 0.0
    %544 = vmatpush1.msra.mxu0 0.0
    %545 = vmatprep.subr.mxu0 0.0
    %546 = vmatpush1.msra.mxu0 0.0
    %547 = vmatprep.subr.mxu0 0.0
    %548 = vmatpush1.msra.mxu0 0.0
    %549 = vmatprep.subr.mxu0 0.0
    %550 = vmatpush1.msra.mxu0 0.0
    %551 = vmatprep.subr.mxu0 0.0
    %552 = vmatpush1.msra.mxu0 0.0
    %553 = vmatprep.subr.mxu0 0.0
    %554 = vmatpush1.msra.mxu0 0.0
    %555 = vmatprep.subr.mxu0 0.0
    %556 = vmatpush1.msra.mxu0 0.0
    %557 = vmatprep.subr.mxu0 0.0
    %558 = vmatpush1.msra.mxu0 0.0
    %559 = vmatprep.subr.mxu0 0.0
    %560 = vmatpush1.msra.mxu0 0.0
    %561 = vmatprep.subr.mxu0 0.0
    %562 = vmatpush1.msra.mxu0 0.0
    %563 = vmatprep.subr.mxu0 0.0
    %564 = vmatpush1.msra.mxu0 0.0
    %565 = vmatprep.subr.mxu0 0.0
    %566 = vmatpush1.msra.mxu0 0.0
    %567 = vmatprep.subr.mxu0 0.0
    %568 = vmatpush1.msra.mxu0 0.0
    %569 = vmatprep.subr.mxu0 0.0
    %570 = vmatpush1.msra.mxu0 0.0
    %571 = vmatprep.mubr.f32.mxu0 0.0
    %572 = vmatmul.mubr.f32.gmra.mrb[0].mxu0 %v427
    %v573 = vpop.f32.mrb[0].mxu0
    %v574 = vadd.f32 0.0, %v573
    %v575 = vpop.f32.mrb[0].mxu0
    %v576 = vadd.f32 0.0, %v575
    %577 = vdwg.mxu0
    %v578 = vadd.f32 %v432, %v503
    %v579 = vadd.f32 %v433, %v505
    %v580 = vadd.f32 %v434, %v574
    %v581 = vadd.f32 %v435, %v576
    %v582 = vxor.u32 %v578, 2147483648
    %v583 = vxor.u32 %v579, 2147483648
    %v584 = vxor.u32 %v580, 2147483648
    %v585 = vmul.f32 %v582, 1.442695
    %v586 = vpow.pop %v585
    %v587 = vmul.f32 %v583, 1.442695
    %v588 = vpow.pop %v587
    %v589 = vmul.f32 %v584, 1.442695
    %v590 = vpow.pop %v589
    %v591 = vadd.f32 %v586, 1.0
    %v592 = vadd.f32 %v588, 1.0
    %v593 = vadd.f32 %v590, 1.0
    %v594 = vrcp.pop %v591
    %v595 = vmul.f32 1.0, %v594
    %v596 = vrcp.pop %v592
    %v597 = vmul.f32 1.0, %v596
    %v598 = vrcp.pop %v593
    %v599 = vmul.f32 1.0, %v598
    %v600 = vtanh.pop %v581
    %v601 = vmul.f32 %v597, %v428
    %v602 = vmul.f32 %v595, %v600
    %v603 = vadd.f32 %v601, %v602
    %v604 = vtanh.pop %v603
    %v605 = vmul.f32 %v599, %v604
    %606 = vst [vmem:[#allocation8] sm:$0xff] %v605
    %s607 = smul.u32 1, 4
    %s608 = smul.addr %s607, 8
    %s609 = scalar_lea.vmem [#allocation4], %s608
    %v610 = vld [vmem:[%s609] sm:$0xff]
    %v611 = vld [vmem:[%s609 + $0x8] sm:$0xff]
    %v612 = vld [vmem:[%s609 + $0x10] sm:$0xff]
    %v613 = vld [vmem:[%s609 + $0x18] sm:$0xff]
    %614 = vmatprep.subr.mxu0 %v364
    %615 = vmatpush1.msra.mxu0 %v363
    %616 = vmatprep.subr.mxu0 %v368
    %617 = vmatpush1.msra.mxu0 %v367
    %618 = vmatprep.subr.mxu0 %v372
    %619 = vmatpush1.msra.mxu0 %v371
    %620 = vmatprep.subr.mxu0 %v376
    %621 = vmatpush1.msra.mxu0 %v375
    %622 = vmatprep.subr.mxu0 %v380
    %623 = vmatpush1.msra.mxu0 %v379
    %624 = vmatprep.subr.mxu0 %v384
    %625 = vmatpush1.msra.mxu0 %v383
    %626 = vmatprep.subr.mxu0 %v388
    %627 = vmatpush1.msra.mxu0 %v387
    %628 = vmatprep.subr.mxu0 %v392
    %629 = vmatpush1.msra.mxu0 %v391
    %630 = vmatprep.subr.mxu0 %v396
    %631 = vmatpush1.msra.mxu0 %v395
    %632 = vmatprep.subr.mxu0 %v400
    %633 = vmatpush1.msra.mxu0 %v399
    %634 = vmatprep.subr.mxu0 %v404
    %635 = vmatpush1.msra.mxu0 %v403
    %636 = vmatprep.subr.mxu0 %v408
    %637 = vmatpush1.msra.mxu0 %v407
    %638 = vmatprep.subr.mxu0 %v412
    %639 = vmatpush1.msra.mxu0 %v411
    %640 = vmatprep.subr.mxu0 %v416
    %641 = vmatpush1.msra.mxu0 %v415
    %642 = vmatprep.subr.mxu0 %v420
    %643 = vmatpush1.msra.mxu0 %v419
    %644 = vmatprep.subr.mxu0 %v424
    %645 = vmatpush1.msra.mxu0 %v423
    %646 = vmatprep.subr.mxu0 0.0
    %647 = vmatpush1.msra.mxu0 0.0
    %648 = vmatprep.subr.mxu0 0.0
    %649 = vmatpush1.msra.mxu0 0.0
    %650 = vmatprep.subr.mxu0 0.0
    %651 = vmatpush1.msra.mxu0 0.0
    %652 = vmatprep.subr.mxu0 0.0
    %653 = vmatpush1.msra.mxu0 0.0
    %654 = vmatprep.subr.mxu0 0.0
    %655 = vmatpush1.msra.mxu0 0.0
    %656 = vmatprep.subr.mxu0 0.0
    %657 = vmatpush1.msra.mxu0 0.0
    %658 = vmatprep.subr.mxu0 0.0
    %659 = vmatpush1.msra.mxu0 0.0
    %660 = vmatprep.subr.mxu0 0.0
    %661 = vmatpush1.msra.mxu0 0.0
    %662 = vmatprep.subr.mxu0 0.0
    %663 = vmatpush1.msra.mxu0 0.0
    %664 = vmatprep.subr.mxu0 0.0
    %665 = vmatpush1.msra.mxu0 0.0
    %666 = vmatprep.subr.mxu0 0.0
    %667 = vmatpush1.msra.mxu0 0.0
    %668 = vmatprep.subr.mxu0 0.0
    %669 = vmatpush1.msra.mxu0 0.0
    %670 = vmatprep.subr.mxu0 0.0
    %671 = vmatpush1.msra.mxu0 0.0
    %672 = vmatprep.subr.mxu0 0.0
    %673 = vmatpush1.msra.mxu0 0.0
    %674 = vmatprep.subr.mxu0 0.0
    %675 = vmatpush1.msra.mxu0 0.0
    %676 = vmatprep.subr.mxu0 0.0
    %677 = vmatpush1.msra.mxu0 0.0
    %678 = vmatprep.mubr.f32.mxu0 0.0
    %679 = vmatmul.mubr.f32.gmra.mrb[0].mxu0 %v605
    %v680 = vpop.f32.mrb[0].mxu0
    %v681 = vadd.f32 0.0, %v680
    %v682 = vpop.f32.mrb[0].mxu0
    %v683 = vadd.f32 0.0, %v682
    %684 = vdwg.mxu0
    %685 = vmatprep.subr.mxu0 %v366
    %686 = vmatpush1.msra.mxu0 %v365
    %687 = vmatprep.subr.mxu0 %v370
    %688 = vmatpush1.msra.mxu0 %v369
    %689 = vmatprep.subr.mxu0 %v374
    %690 = vmatpush1.msra.mxu0 %v373
    %691 = vmatprep.subr.mxu0 %v378
    %692 = vmatpush1.msra.mxu0 %v377
    %693 = vmatprep.subr.mxu0 %v382
    %694 = vmatpush1.msra.mxu0 %v381
    %695 = vmatprep.subr.mxu0 %v386
    %696 = vmatpush1.msra.mxu0 %v385
    %697 = vmatprep.subr.mxu0 %v390
    %698 = vmatpush1.msra.mxu0 %v389
    %699 = vmatprep.subr.mxu0 %v394
    %700 = vmatpush1.msra.mxu0 %v393
    %701 = vmatprep.subr.mxu0 %v398
    %702 = vmatpush1.msra.mxu0 %v397
    %703 = vmatprep.subr.mxu0 %v402
    %704 = vmatpush1.msra.mxu0 %v401
    %705 = vmatprep.subr.mxu0 %v406
    %706 = vmatpush1.msra.mxu0 %v405
    %707 = vmatprep.subr.mxu0 %v410
    %708 = vmatpush1.msra.mxu0 %v409
    %709 = vmatprep.subr.mxu0 %v414
    %710 = vmatpush1.msra.mxu0 %v413
    %711 = vmatprep.subr.mxu0 %v418
    %712 = vmatpush1.msra.mxu0 %v417
    %713 = vmatprep.subr.mxu0 %v422
    %714 = vmatpush1.msra.mxu0 %v421
    %715 = vmatprep.subr.mxu0 %v426
    %716 = vmatpush1.msra.mxu0 %v425
    %717 = vmatprep.subr.mxu0 0.0
    %718 = vmatpush1.msra.mxu0 0.0
    %719 = vmatprep.subr.mxu0 0.0
    %720 = vmatpush1.msra.mxu0 0.0
    %721 = vmatprep.subr.mxu0 0.0
    %722 = vmatpush1.msra.mxu0 0.0
    %723 = vmatprep.subr.mxu0 0.0
    %724 = vmatpush1.msra.mxu0 0.0
    %725 = vmatprep.subr.mxu0 0.0
    %726 = vmatpush1.msra.mxu0 0.0
    %727 = vmatprep.subr.mxu0 0.0
    %728 = vmatpush1.msra.mxu0 0.0
    %729 = vmatprep.subr.mxu0 0.0
    %730 = vmatpush1.msra.mxu0 0.0
    %731 = vmatprep.subr.mxu0 0.0
    %732 = vmatpush1.msra.mxu0 0.0
    %733 = vmatprep.subr.mxu0 0.0
    %734 = vmatpush1.msra.mxu0 0.0
    %735 = vmatprep.subr.mxu0 0.0
    %736 = vmatpush1.msra.mxu0 0.0
    %737 = vmatprep.subr.mxu0 0.0
    %738 = vmatpush1.msra.mxu0 0.0
    %739 = vmatprep.subr.mxu0 0.0
    %740 = vmatpush1.msra.mxu0 0.0
    %741 = vmatprep.subr.mxu0 0.0
    %742 = vmatpush1.msra.mxu0 0.0
    %743 = vmatprep.subr.mxu0 0.0
    %744 = vmatpush1.msra.mxu0 0.0
    %745 = vmatprep.subr.mxu0 0.0
    %746 = vmatpush1.msra.mxu0 0.0
    %747 = vmatprep.subr.mxu0 0.0
    %748 = vmatpush1.msra.mxu0 0.0
    %749 = vmatprep.mubr.f32.mxu0 0.0
    %750 = vmatmul.mubr.f32.gmra.mrb[0].mxu0 %v605
    %v751 = vpop.f32.mrb[0].mxu0
    %v752 = vadd.f32 0.0, %v751
    %v753 = vpop.f32.mrb[0].mxu0
    %v754 = vadd.f32 0.0, %v753
    %755 = vdwg.mxu0
    %v756 = vadd.f32 %v610, %v681
    %v757 = vadd.f32 %v611, %v683
    %v758 = vadd.f32 %v612, %v752
    %v759 = vadd.f32 %v613, %v754
    %v760 = vxor.u32 %v756, 2147483648
    %v761 = vxor.u32 %v757, 2147483648
    %v762 = vxor.u32 %v758, 2147483648
    %v763 = vmul.f32 %v760, 1.442695
    %v764 = vpow.pop %v763
    %v765 = vmul.f32 %v761, 1.442695
    %v766 = vpow.pop %v765
    %v767 = vmul.f32 %v762, 1.442695
    %v768 = vpow.pop %v767
    %v769 = vadd.f32 %v764, 1.0
    %v770 = vadd.f32 %v766, 1.0
    %v771 = vadd.f32 %v768, 1.0
    %v772 = vrcp.pop %v769
    %v773 = vmul.f32 1.0, %v772
    %v774 = vrcp.pop %v770
    %v775 = vmul.f32 1.0, %v774
    %v776 = vrcp.pop %v771
    %v777 = vmul.f32 1.0, %v776
    %v778 = vtanh.pop %v759
    %v779 = vmul.f32 %v775, %v603
    %v780 = vmul.f32 %v773, %v778
    %v781 = vadd.f32 %v779, %v780
    %v782 = vtanh.pop %v781
    %v783 = vmul.f32 %v777, %v782
    %s784 = scalar_lea.vmem [#allocation8], 8
    %785 = vst [vmem:[%s784] sm:$0xff] %v783
    %s786 = smul.u32 2, 4
    %s787 = smul.addr %s786, 8
    %s788 = scalar_lea.vmem [#allocation4], %s787
    %v789 = vld [vmem:[%s788] sm:$0xff]
    %v790 = vld [vmem:[%s788 + $0x8] sm:$0xff]
    %v791 = vld [vmem:[%s788 + $0x10] sm:$0xff]
    %v792 = vld [vmem:[%s788 + $0x18] sm:$0xff]
    %793 = vmatprep.subr.mxu0 %v364
    %794 = vmatpush1.msra.mxu0 %v363
    %795 = vmatprep.subr.mxu0 %v368
    %796 = vmatpush1.msra.mxu0 %v367
    %797 = vmatprep.subr.mxu0 %v372
    %798 = vmatpush1.msra.mxu0 %v371
    %799 = vmatprep.subr.mxu0 %v376
    %800 = vmatpush1.msra.mxu0 %v375
    %801 = vmatprep.subr.mxu0 %v380
    %802 = vmatpush1.msra.mxu0 %v379
    %803 = vmatprep.subr.mxu0 %v384
    %804 = vmatpush1.msra.mxu0 %v383
    %805 = vmatprep.subr.mxu0 %v388
    %806 = vmatpush1.msra.mxu0 %v387
    %807 = vmatprep.subr.mxu0 %v392
    %808 = vmatpush1.msra.mxu0 %v391
    %809 = vmatprep.subr.mxu0 %v396
    %810 = vmatpush1.msra.mxu0 %v395
    %811 = vmatprep.subr.mxu0 %v400
    %812 = vmatpush1.msra.mxu0 %v399
    %813 = vmatprep.subr.mxu0 %v404
    %814 = vmatpush1.msra.mxu0 %v403
    %815 = vmatprep.subr.mxu0 %v408
    %816 = vmatpush1.msra.mxu0 %v407
    %817 = vmatprep.subr.mxu0 %v412
    %818 = vmatpush1.msra.mxu0 %v411
    %819 = vmatprep.subr.mxu0 %v416
    %820 = vmatpush1.msra.mxu0 %v415
    %821 = vmatprep.subr.mxu0 %v420
    %822 = vmatpush1.msra.mxu0 %v419
    %823 = vmatprep.subr.mxu0 %v424
    %824 = vmatpush1.msra.mxu0 %v423
    %825 = vmatprep.subr.mxu0 0.0
    %826 = vmatpush1.msra.mxu0 0.0
    %827 = vmatprep.subr.mxu0 0.0
    %828 = vmatpush1.msra.mxu0 0.0
    %829 = vmatprep.subr.mxu0 0.0
    %830 = vmatpush1.msra.mxu0 0.0
    %831 = vmatprep.subr.mxu0 0.0
    %832 = vmatpush1.msra.mxu0 0.0
    %833 = vmatprep.subr.mxu0 0.0
    %834 = vmatpush1.msra.mxu0 0.0
    %835 = vmatprep.subr.mxu0 0.0
    %836 = vmatpush1.msra.mxu0 0.0
    %837 = vmatprep.subr.mxu0 0.0
    %838 = vmatpush1.msra.mxu0 0.0
    %839 = vmatprep.subr.mxu0 0.0
    %840 = vmatpush1.msra.mxu0 0.0
    %841 = vmatprep.subr.mxu0 0.0
    %842 = vmatpush1.msra.mxu0 0.0
    %843 = vmatprep.subr.mxu0 0.0
    %844 = vmatpush1.msra.mxu0 0.0
    %845 = vmatprep.subr.mxu0 0.0
    %846 = vmatpush1.msra.mxu0 0.0
    %847 = vmatprep.subr.mxu0 0.0
    %848 = vmatpush1.msra.mxu0 0.0
    %849 = vmatprep.subr.mxu0 0.0
    %850 = vmatpush1.msra.mxu0 0.0
    %851 = vmatprep.subr.mxu0 0.0
    %852 = vmatpush1.msra.mxu0 0.0
    %853 = vmatprep.subr.mxu0 0.0
    %854 = vmatpush1.msra.mxu0 0.0
    %855 = vmatprep.subr.mxu0 0.0
    %856 = vmatpush1.msra.mxu0 0.0
    %857 = vmatprep.mubr.f32.mxu0 0.0
    %858 = vmatmul.mubr.f32.gmra.mrb[0].mxu0 %v783
    %v859 = vpop.f32.mrb[0].mxu0
    %v860 = vadd.f32 0.0, %v859
    %v861 = vpop.f32.mrb[0].mxu0
    %v862 = vadd.f32 0.0, %v861
    %863 = vdwg.mxu0
    %864 = vmatprep.subr.mxu0 %v366
    %865 = vmatpush1.msra.mxu0 %v365
    %866 = vmatprep.subr.mxu0 %v370
    %867 = vmatpush1.msra.mxu0 %v369
    %868 = vmatprep.subr.mxu0 %v374
    %869 = vmatpush1.msra.mxu0 %v373
    %870 = vmatprep.subr.mxu0 %v378
    %871 = vmatpush1.msra.mxu0 %v377
    %872 = vmatprep.subr.mxu0 %v382
    %873 = vmatpush1.msra.mxu0 %v381
    %874 = vmatprep.subr.mxu0 %v386
    %875 = vmatpush1.msra.mxu0 %v385
    %876 = vmatprep.subr.mxu0 %v390
    %877 = vmatpush1.msra.mxu0 %v389
    %878 = vmatprep.subr.mxu0 %v394
    %879 = vmatpush1.msra.mxu0 %v393
    %880 = vmatprep.subr.mxu0 %v398
    %881 = vmatpush1.msra.mxu0 %v397
    %882 = vmatprep.subr.mxu0 %v402
    %883 = vmatpush1.msra.mxu0 %v401
    %884 = vmatprep.subr.mxu0 %v406
    %885 = vmatpush1.msra.mxu0 %v405
    %886 = vmatprep.subr.mxu0 %v410
    %887 = vmatpush1.msra.mxu0 %v409
    %888 = vmatprep.subr.mxu0 %v414
    %889 = vmatpush1.msra.mxu0 %v413
    %890 = vmatprep.subr.mxu0 %v418
    %891 = vmatpush1.msra.mxu0 %v417
    %892 = vmatprep.subr.mxu0 %v422
    %893 = vmatpush1.msra.mxu0 %v421
    %894 = vmatprep.subr.mxu0 %v426
    %895 = vmatpush1.msra.mxu0 %v425
    %896 = vmatprep.subr.mxu0 0.0
    %897 = vmatpush1.msra.mxu0 0.0
    %898 = vmatprep.subr.mxu0 0.0
    %899 = vmatpush1.msra.mxu0 0.0
    %900 = vmatprep.subr.mxu0 0.0
    %901 = vmatpush1.msra.mxu0 0.0
    %902 = vmatprep.subr.mxu0 0.0
    %903 = vmatpush1.msra.mxu0 0.0
    %904 = vmatprep.subr.mxu0 0.0
    %905 = vmatpush1.msra.mxu0 0.0
    %906 = vmatprep.subr.mxu0 0.0
    %907 = vmatpush1.msra.mxu0 0.0
    %908 = vmatprep.subr.mxu0 0.0
    %909 = vmatpush1.msra.mxu0 0.0
    %910 = vmatprep.subr.mxu0 0.0
    %911 = vmatpush1.msra.mxu0 0.0
    %912 = vmatprep.subr.mxu0 0.0
    %913 = vmatpush1.msra.mxu0 0.0
    %914 = vmatprep.subr.mxu0 0.0
    %915 = vmatpush1.msra.mxu0 0.0
    %916 = vmatprep.subr.mxu0 0.0
    %917 = vmatpush1.msra.mxu0 0.0
    %918 = vmatprep.subr.mxu0 0.0
    %919 = vmatpush1.msra.mxu0 0.0
    %920 = vmatprep.subr.mxu0 0.0
    %921 = vmatpush1.msra.mxu0 0.0
    %922 = vmatprep.subr.mxu0 0.0
    %923 = vmatpush1.msra.mxu0 0.0
    %924 = vmatprep.subr.mxu0 0.0
    %925 = vmatpush1.msra.mxu0 0.0
    %926 = vmatprep.subr.mxu0 0.0
    %927 = vmatpush1.msra.mxu0 0.0
    %928 = vmatprep.mubr.f32.mxu0 0.0
    %929 = vmatmul.mubr.f32.gmra.mrb[0].mxu0 %v783
    %v930 = vpop.f32.mrb[0].mxu0
    %v931 = vadd.f32 0.0, %v930
    %v932 = vpop.f32.mrb[0].mxu0
    %v933 = vadd.f32 0.0, %v932
    %934 = vdwg.mxu0
    %v935 = vadd.f32 %v789, %v860
    %v936 = vadd.f32 %v790, %v862
    %v937 = vadd.f32 %v791, %v931
    %v938 = vadd.f32 %v792, %v933
    %v939 = vxor.u32 %v935, 2147483648
    %v940 = vxor.u32 %v936, 2147483648
    %v941 = vxor.u32 %v937, 2147483648
    %v942 = vmul.f32 %v939, 1.442695
    %v943 = vpow.pop %v942
    %v944 = vmul.f32 %v940, 1.442695
    %v945 = vpow.pop %v944
    %v946 = vmul.f32 %v941, 1.442695
    %v947 = vpow.pop %v946
    %v948 = vadd.f32 %v943, 1.0
    %v949 = vadd.f32 %v945, 1.0
    %v950 = vadd.f32 %v947, 1.0
    %v951 = vrcp.pop %v948
    %v952 = vmul.f32 1.0, %v951
    %v953 = vrcp.pop %v949
    %v954 = vmul.f32 1.0, %v953
    %v955 = vrcp.pop %v950
    %v956 = vmul.f32 1.0, %v955
    %v957 = vtanh.pop %v938
    %v958 = vmul.f32 %v954, %v781
    %v959 = vmul.f32 %v952, %v957
    %v960 = vadd.f32 %v958, %v959
    %v961 = vtanh.pop %v960
    %v962 = vmul.f32 %v956, %v961
    %s963 = scalar_lea.vmem [#allocation8], 16
    %964 = vst [vmem:[%s963] sm:$0xff] %v962
    %s965 = smul.u32 3, 4
    %s966 = smul.addr %s965, 8
    %s967 = scalar_lea.vmem [#allocation4], %s966
    %v968 = vld [vmem:[%s967] sm:$0xff]
    %v969 = vld [vmem:[%s967 + $0x8] sm:$0xff]
    %v970 = vld [vmem:[%s967 + $0x10] sm:$0xff]
    %v971 = vld [vmem:[%s967 + $0x18] sm:$0xff]
    %972 = vmatprep.subr.mxu0 %v364
    %973 = vmatpush1.msra.mxu0 %v363
    %974 = vmatprep.subr.mxu0 %v368
    %975 = vmatpush1.msra.mxu0 %v367
    %976 = vmatprep.subr.mxu0 %v372
    %977 = vmatpush1.msra.mxu0 %v371
    %978 = vmatprep.subr.mxu0 %v376
    %979 = vmatpush1.msra.mxu0 %v375
    %980 = vmatprep.subr.mxu0 %v380
    %981 = vmatpush1.msra.mxu0 %v379
    %982 = vmatprep.subr.mxu0 %v384
    %983 = vmatpush1.msra.mxu0 %v383
    %984 = vmatprep.subr.mxu0 %v388
    %985 = vmatpush1.msra.mxu0 %v387
    %986 = vmatprep.subr.mxu0 %v392
    %987 = vmatpush1.msra.mxu0 %v391
    %988 = vmatprep.subr.mxu0 %v396
    %989 = vmatpush1.msra.mxu0 %v395
    %990 = vmatprep.subr.mxu0 %v400
    %991 = vmatpush1.msra.mxu0 %v399
    %992 = vmatprep.subr.mxu0 %v404
    %993 = vmatpush1.msra.mxu0 %v403
    %994 = vmatprep.subr.mxu0 %v408
    %995 = vmatpush1.msra.mxu0 %v407
    %996 = vmatprep.subr.mxu0 %v412
    %997 = vmatpush1.msra.mxu0 %v411
    %998 = vmatprep.subr.mxu0 %v416
    %999 = vmatpush1.msra.mxu0 %v415
    %1000 = vmatprep.subr.mxu0 %v420
    %1001 = vmatpush1.msra.mxu0 %v419
    %1002 = vmatprep.subr.mxu0 %v424
    %1003 = vmatpush1.msra.mxu0 %v423
    %1004 = vmatprep.subr.mxu0 0.0
    %1005 = vmatpush1.msra.mxu0 0.0
    %1006 = vmatprep.subr.mxu0 0.0
    %1007 = vmatpush1.msra.mxu0 0.0
    %1008 = vmatprep.subr.mxu0 0.0
    %1009 = vmatpush1.msra.mxu0 0.0
    %1010 = vmatprep.subr.mxu0 0.0
    %1011 = vmatpush1.msra.mxu0 0.0
    %1012 = vmatprep.subr.mxu0 0.0
    %1013 = vmatpush1.msra.mxu0 0.0
    %1014 = vmatprep.subr.mxu0 0.0
    %1015 = vmatpush1.msra.mxu0 0.0
    %1016 = vmatprep.subr.mxu0 0.0
    %1017 = vmatpush1.msra.mxu0 0.0
    %1018 = vmatprep.subr.mxu0 0.0
    %1019 = vmatpush1.msra.mxu0 0.0
    %1020 = vmatprep.subr.mxu0 0.0
    %1021 = vmatpush1.msra.mxu0 0.0
    %1022 = vmatprep.subr.mxu0 0.0
    %1023 = vmatpush1.msra.mxu0 0.0
    %1024 = vmatprep.subr.mxu0 0.0
    %1025 = vmatpush1.msra.mxu0 0.0
    %1026 = vmatprep.subr.mxu0 0.0
    %1027 = vmatpush1.msra.mxu0 0.0
    %1028 = vmatprep.subr.mxu0 0.0
    %1029 = vmatpush1.msra.mxu0 0.0
    %1030 = vmatprep.subr.mxu0 0.0
    %1031 = vmatpush1.msra.mxu0 0.0
    %1032 = vmatprep.subr.mxu0 0.0
    %1033 = vmatpush1.msra.mxu0 0.0
    %1034 = vmatprep.subr.mxu0 0.0
    %1035 = vmatpush1.msra.mxu0 0.0
    %1036 = vmatprep.mubr.f32.mxu0 0.0
    %1037 = vmatmul.mubr.f32.gmra.mrb[0].mxu0 %v962
    %v1038 = vpop.f32.mrb[0].mxu0
    %v1039 = vadd.f32 0.0, %v1038
    %v1040 = vpop.f32.mrb[0].mxu0
    %v1041 = vadd.f32 0.0, %v1040
    %1042 = vdwg.mxu0
    %1043 = vmatprep.subr.mxu0 %v366
    %1044 = vmatpush1.msra.mxu0 %v365
    %1045 = vmatprep.subr.mxu0 %v370
    %1046 = vmatpush1.msra.mxu0 %v369
    %1047 = vmatprep.subr.mxu0 %v374
    %1048 = vmatpush1.msra.mxu0 %v373
    %1049 = vmatprep.subr.mxu0 %v378
    %1050 = vmatpush1.msra.mxu0 %v377
    %1051 = vmatprep.subr.mxu0 %v382
    %1052 = vmatpush1.msra.mxu0 %v381
    %1053 = vmatprep.subr.mxu0 %v386
    %1054 = vmatpush1.msra.mxu0 %v385
    %1055 = vmatprep.subr.mxu0 %v390
    %1056 = vmatpush1.msra.mxu0 %v389
    %1057 = vmatprep.subr.mxu0 %v394
    %1058 = vmatpush1.msra.mxu0 %v393
    %1059 = vmatprep.subr.mxu0 %v398
    %1060 = vmatpush1.msra.mxu0 %v397
    %1061 = vmatprep.subr.mxu0 %v402
    %1062 = vmatpush1.msra.mxu0 %v401
    %1063 = vmatprep.subr.mxu0 %v406
    %1064 = vmatpush1.msra.mxu0 %v405
    %1065 = vmatprep.subr.mxu0 %v410
    %1066 = vmatpush1.msra.mxu0 %v409
    %1067 = vmatprep.subr.mxu0 %v414
    %1068 = vmatpush1.msra.mxu0 %v413
    %1069 = vmatprep.subr.mxu0 %v418
    %1070 = vmatpush1.msra.mxu0 %v417
    %1071 = vmatprep.subr.mxu0 %v422
    %1072 = vmatpush1.msra.mxu0 %v421
    %1073 = vmatprep.subr.mxu0 %v426
    %1074 = vmatpush1.msra.mxu0 %v425
    %1075 = vmatprep.subr.mxu0 0.0
    %1076 = vmatpush1.msra.mxu0 0.0
    %1077 = vmatprep.subr.mxu0 0.0
    %1078 = vmatpush1.msra.mxu0 0.0
    %1079 = vmatprep.subr.mxu0 0.0
    %1080 = vmatpush1.msra.mxu0 0.0
    %1081 = vmatprep.subr.mxu0 0.0
    %1082 = vmatpush1.msra.mxu0 0.0
    %1083 = vmatprep.subr.mxu0 0.0
    %1084 = vmatpush1.msra.mxu0 0.0
    %1085 = vmatprep.subr.mxu0 0.0
    %1086 = vmatpush1.msra.mxu0 0.0
    %1087 = vmatprep.subr.mxu0 0.0
    %1088 = vmatpush1.msra.mxu0 0.0
    %1089 = vmatprep.subr.mxu0 0.0
    %1090 = vmatpush1.msra.mxu0 0.0
    %1091 = vmatprep.subr.mxu0 0.0
    %1092 = vmatpush1.msra.mxu0 0.0
    %1093 = vmatprep.subr.mxu0 0.0
    %1094 = vmatpush1.msra.mxu0 0.0
    %1095 = vmatprep.subr.mxu0 0.0
    %1096 = vmatpush1.msra.mxu0 0.0
    %1097 = vmatprep.subr.mxu0 0.0
    %1098 = vmatpush1.msra.mxu0 0.0
    %1099 = vmatprep.subr.mxu0 0.0
    %1100 = vmatpush1.msra.mxu0 0.0
    %1101 = vmatprep.subr.mxu0 0.0
    %1102 = vmatpush1.msra.mxu0 0.0
    %1103 = vmatprep.subr.mxu0 0.0
    %1104 = vmatpush1.msra.mxu0 0.0
    %1105 = vmatprep.subr.mxu0 0.0
    %1106 = vmatpush1.msra.mxu0 0.0
    %1107 = vmatprep.mubr.f32.mxu0 0.0
    %1108 = vmatmul.mubr.f32.gmra.mrb[0].mxu0 %v962
    %v1109 = vpop.f32.mrb[0].mxu0
    %v1110 = vadd.f32 0.0, %v1109
    %v1111 = vpop.f32.mrb[0].mxu0
    %v1112 = vadd.f32 0.0, %v1111
    %1113 = vdwg.mxu0
    %v1114 = vadd.f32 %v968, %v1039
    %v1115 = vadd.f32 %v969, %v1041
    %v1116 = vadd.f32 %v970, %v1110
    %v1117 = vadd.f32 %v971, %v1112
    %v1118 = vxor.u32 %v1114, 2147483648
    %v1119 = vxor.u32 %v1115, 2147483648
    %v1120 = vxor.u32 %v1116, 2147483648
    %v1121 = vmul.f32 %v1118, 1.442695
    %v1122 = vpow.pop %v1121
    %v1123 = vmul.f32 %v1119, 1.442695
    %v1124 = vpow.pop %v1123
    %v1125 = vmul.f32 %v1120, 1.442695
    %v1126 = vpow.pop %v1125
    %v1127 = vadd.f32 %v1122, 1.0
    %v1128 = vadd.f32 %v1124, 1.0
    %v1129 = vadd.f32 %v1126, 1.0
    %v1130 = vrcp.pop %v1127
    %v1131 = vmul.f32 1.0, %v1130
    %v1132 = vrcp.pop %v1128
    %v1133 = vmul.f32 1.0, %v1132
    %v1134 = vrcp.pop %v1129
    %v1135 = vmul.f32 1.0, %v1134
    %v1136 = vtanh.pop %v1117
    %v1137 = vmul.f32 %v1133, %v960
    %v1138 = vmul.f32 %v1131, %v1136
    %v1139 = vadd.f32 %v1137, %v1138
    %v1140 = vtanh.pop %v1139
    %v1141 = vmul.f32 %v1135, %v1140
    %s1142 = scalar_lea.vmem [#allocation8], 24
    %1143 = vst [vmem:[%s1142] sm:$0xff] %v1141
    %s1144 = smul.u32 4, 4
    %s1145 = smul.addr %s1144, 8
    %s1146 = scalar_lea.vmem [#allocation4], %s1145
    %v1147 = vld [vmem:[%s1146] sm:$0xff]
    %v1148 = vld [vmem:[%s1146 + $0x8] sm:$0xff]
    %v1149 = vld [vmem:[%s1146 + $0x10] sm:$0xff]
    %v1150 = vld [vmem:[%s1146 + $0x18] sm:$0xff]
    %1151 = vmatprep.subr.mxu0 %v364
    %1152 = vmatpush1.msra.mxu0 %v363
    %1153 = vmatprep.subr.mxu0 %v368
    %1154 = vmatpush1.msra.mxu0 %v367
    %1155 = vmatprep.subr.mxu0 %v372
    %1156 = vmatpush1.msra.mxu0 %v371
    %1157 = vmatprep.subr.mxu0 %v376
    %1158 = vmatpush1.msra.mxu0 %v375
    %1159 = vmatprep.subr.mxu0 %v380
    %1160 = vmatpush1.msra.mxu0 %v379
    %1161 = vmatprep.subr.mxu0 %v384
    %1162 = vmatpush1.msra.mxu0 %v383
    %1163 = vmatprep.subr.mxu0 %v388
    %1164 = vmatpush1.msra.mxu0 %v387
    %1165 = vmatprep.subr.mxu0 %v392
    %1166 = vmatpush1.msra.mxu0 %v391
    %1167 = vmatprep.subr.mxu0 %v396
    %1168 = vmatpush1.msra.mxu0 %v395
    %1169 = vmatprep.subr.mxu0 %v400
    %1170 = vmatpush1.msra.mxu0 %v399
    %1171 = vmatprep.subr.mxu0 %v404
    %1172 = vmatpush1.msra.mxu0 %v403
    %1173 = vmatprep.subr.mxu0 %v408
    %1174 = vmatpush1.msra.mxu0 %v407
    %1175 = vmatprep.subr.mxu0 %v412
    %1176 = vmatpush1.msra.mxu0 %v411
    %1177 = vmatprep.subr.mxu0 %v416
    %1178 = vmatpush1.msra.mxu0 %v415
    %1179 = vmatprep.subr.mxu0 %v420
    %1180 = vmatpush1.msra.mxu0 %v419
    %1181 = vmatprep.subr.mxu0 %v424
    %1182 = vmatpush1.msra.mxu0 %v423
    %1183 = vmatprep.subr.mxu0 0.0
    %1184 = vmatpush1.msra.mxu0 0.0
    %1185 = vmatprep.subr.mxu0 0.0
    %1186 = vmatpush1.msra.mxu0 0.0
    %1187 = vmatprep.subr.mxu0 0.0
    %1188 = vmatpush1.msra.mxu0 0.0
    %1189 = vmatprep.subr.mxu0 0.0
    %1190 = vmatpush1.msra.mxu0 0.0
    %1191 = vmatprep.subr.mxu0 0.0
    %1192 = vmatpush1.msra.mxu0 0.0
    %1193 = vmatprep.subr.mxu0 0.0
    %1194 = vmatpush1.msra.mxu0 0.0
    %1195 = vmatprep.subr.mxu0 0.0
    %1196 = vmatpush1.msra.mxu0 0.0
    %1197 = vmatprep.subr.mxu0 0.0
    %1198 = vmatpush1.msra.mxu0 0.0
    %1199 = vmatprep.subr.mxu0 0.0
    %1200 = vmatpush1.msra.mxu0 0.0
    %1201 = vmatprep.subr.mxu0 0.0
    %1202 = vmatpush1.msra.mxu0 0.0
    %1203 = vmatprep.subr.mxu0 0.0
    %1204 = vmatpush1.msra.mxu0 0.0
    %1205 = vmatprep.subr.mxu0 0.0
    %1206 = vmatpush1.msra.mxu0 0.0
    %1207 = vmatprep.subr.mxu0 0.0
    %1208 = vmatpush1.msra.mxu0 0.0
    %1209 = vmatprep.subr.mxu0 0.0
    %1210 = vmatpush1.msra.mxu0 0.0
    %1211 = vmatprep.subr.mxu0 0.0
    %1212 = vmatpush1.msra.mxu0 0.0
    %1213 = vmatprep.subr.mxu0 0.0
    %1214 = vmatpush1.msra.mxu0 0.0
    %1215 = vmatprep.mubr.f32.mxu0 0.0
    %1216 = vmatmul.mubr.f32.gmra.mrb[0].mxu0 %v1141
    %v1217 = vpop.f32.mrb[0].mxu0
    %v1218 = vadd.f32 0.0, %v1217
    %v1219 = vpop.f32.mrb[0].mxu0
    %v1220 = vadd.f32 0.0, %v1219
    %1221 = vdwg.mxu0
    %1222 = vmatprep.subr.mxu0 %v366
    %1223 = vmatpush1.msra.mxu0 %v365
    %1224 = vmatprep.subr.mxu0 %v370
    %1225 = vmatpush1.msra.mxu0 %v369
    %1226 = vmatprep.subr.mxu0 %v374
    %1227 = vmatpush1.msra.mxu0 %v373
    %1228 = vmatprep.subr.mxu0 %v378
    %1229 = vmatpush1.msra.mxu0 %v377
    %1230 = vmatprep.subr.mxu0 %v382
    %1231 = vmatpush1.msra.mxu0 %v381
    %1232 = vmatprep.subr.mxu0 %v386
    %1233 = vmatpush1.msra.mxu0 %v385
    %1234 = vmatprep.subr.mxu0 %v390
    %1235 = vmatpush1.msra.mxu0 %v389
    %1236 = vmatprep.subr.mxu0 %v394
    %1237 = vmatpush1.msra.mxu0 %v393
    %1238 = vmatprep.subr.mxu0 %v398
    %1239 = vmatpush1.msra.mxu0 %v397
    %1240 = vmatprep.subr.mxu0 %v402
    %1241 = vmatpush1.msra.mxu0 %v401
    %1242 = vmatprep.subr.mxu0 %v406
    %1243 = vmatpush1.msra.mxu0 %v405
    %1244 = vmatprep.subr.mxu0 %v410
    %1245 = vmatpush1.msra.mxu0 %v409
    %1246 = vmatprep.subr.mxu0 %v414
    %1247 = vmatpush1.msra.mxu0 %v413
    %1248 = vmatprep.subr.mxu0 %v418
    %1249 = vmatpush1.msra.mxu0 %v417
    %1250 = vmatprep.subr.mxu0 %v422
    %1251 = vmatpush1.msra.mxu0 %v421
    %1252 = vmatprep.subr.mxu0 %v426
    %1253 = vmatpush1.msra.mxu0 %v425
    %1254 = vmatprep.subr.mxu0 0.0
    %1255 = vmatpush1.msra.mxu0 0.0
    %1256 = vmatprep.subr.mxu0 0.0
    %1257 = vmatpush1.msra.mxu0 0.0
    %1258 = vmatprep.subr.mxu0 0.0
    %1259 = vmatpush1.msra.mxu0 0.0
    %1260 = vmatprep.subr.mxu0 0.0
    %1261 = vmatpush1.msra.mxu0 0.0
    %1262 = vmatprep.subr.mxu0 0.0
    %1263 = vmatpush1.msra.mxu0 0.0
    %1264 = vmatprep.subr.mxu0 0.0
    %1265 = vmatpush1.msra.mxu0 0.0
    %1266 = vmatprep.subr.mxu0 0.0
    %1267 = vmatpush1.msra.mxu0 0.0
    %1268 = vmatprep.subr.mxu0 0.0
    %1269 = vmatpush1.msra.mxu0 0.0
    %1270 = vmatprep.subr.mxu0 0.0
    %1271 = vmatpush1.msra.mxu0 0.0
    %1272 = vmatprep.subr.mxu0 0.0
    %1273 = vmatpush1.msra.mxu0 0.0
    %1274 = vmatprep.subr.mxu0 0.0
    %1275 = vmatpush1.msra.mxu0 0.0
    %1276 = vmatprep.subr.mxu0 0.0
    %1277 = vmatpush1.msra.mxu0 0.0
    %1278 = vmatprep.subr.mxu0 0.0
    %1279 = vmatpush1.msra.mxu0 0.0
    %1280 = vmatprep.subr.mxu0 0.0
    %1281 = vmatpush1.msra.mxu0 0.0
    %1282 = vmatprep.subr.mxu0 0.0
    %1283 = vmatpush1.msra.mxu0 0.0
    %1284 = vmatprep.subr.mxu0 0.0
    %1285 = vmatpush1.msra.mxu0 0.0
    %1286 = vmatprep.mubr.f32.mxu0 0.0
    %1287 = vmatmul.mubr.f32.gmra.mrb[0].mxu0 %v1141
    %v1288 = vpop.f32.mrb[0].mxu0
    %v1289 = vadd.f32 0.0, %v1288
    %v1290 = vpop.f32.mrb[0].mxu0
    %v1291 = vadd.f32 0.0, %v1290
    %1292 = vdwg.mxu0
    %v1293 = vadd.f32 %v1147, %v1218
    %v1294 = vadd.f32 %v1148, %v1220
    %v1295 = vadd.f32 %v1149, %v1289
    %v1296 = vadd.f32 %v1150, %v1291
    %v1297 = vxor.u32 %v1293, 2147483648
    %v1298 = vxor.u32 %v1294, 2147483648
    %v1299 = vxor.u32 %v1295, 2147483648
    %v1300 = vmul.f32 %v1297, 1.442695
    %v1301 = vpow.pop %v1300
    %v1302 = vmul.f32 %v1298, 1.442695
    %v1303 = vpow.pop %v1302
    %v1304 = vmul.f32 %v1299, 1.442695
    %v1305 = vpow.pop %v1304
    %v1306 = vadd.f32 %v1301, 1.0
    %v1307 = vadd.f32 %v1303, 1.0
    %v1308 = vadd.f32 %v1305, 1.0
    %v1309 = vrcp.pop %v1306
    %v1310 = vmul.f32 1.0, %v1309
    %v1311 = vrcp.pop %v1307
    %v1312 = vmul.f32 1.0, %v1311
    %v1313 = vrcp.pop %v1308
    %v1314 = vmul.f32 1.0, %v1313
    %v1315 = vtanh.pop %v1296
    %v1316 = vmul.f32 %v1312, %v1139
    %v1317 = vmul.f32 %v1310, %v1315
    %v1318 = vadd.f32 %v1316, %v1317
    %v1319 = vtanh.pop %v1318
    %v1320 = vmul.f32 %v1314, %v1319
    %s1321 = scalar_lea.vmem [#allocation8], 32
    %1322 = vst [vmem:[%s1321] sm:$0xff] %v1320
    %s1323 = smul.u32 5, 4
    %s1324 = smul.addr %s1323, 8
    %s1325 = scalar_lea.vmem [#allocation4], %s1324
    %v1326 = vld [vmem:[%s1325] sm:$0xff]
    %v1327 = vld [vmem:[%s1325 + $0x8] sm:$0xff]
    %v1328 = vld [vmem:[%s1325 + $0x10] sm:$0xff]
    %v1329 = vld [vmem:[%s1325 + $0x18] sm:$0xff]
    %1330 = vmatprep.subr.mxu0 %v364
    %1331 = vmatpush1.msra.mxu0 %v363
    %1332 = vmatprep.subr.mxu0 %v368
    %1333 = vmatpush1.msra.mxu0 %v367
    %1334 = vmatprep.subr.mxu0 %v372
    %1335 = vmatpush1.msra.mxu0 %v371
    %1336 = vmatprep.subr.mxu0 %v376
    %1337 = vmatpush1.msra.mxu0 %v375
    %1338 = vmatprep.subr.mxu0 %v380
    %1339 = vmatpush1.msra.mxu0 %v379
    %1340 = vmatprep.subr.mxu0 %v384
    %1341 = vmatpush1.msra.mxu0 %v383
    %1342 = vmatprep.subr.mxu0 %v388
    %1343 = vmatpush1.msra.mxu0 %v387
    %1344 = vmatprep.subr.mxu0 %v392
    %1345 = vmatpush1.msra.mxu0 %v391
    %1346 = vmatprep.subr.mxu0 %v396
    %1347 = vmatpush1.msra.mxu0 %v395
    %1348 = vmatprep.subr.mxu0 %v400
    %1349 = vmatpush1.msra.mxu0 %v399
    %1350 = vmatprep.subr.mxu0 %v404
    %1351 = vmatpush1.msra.mxu0 %v403
    %1352 = vmatprep.subr.mxu0 %v408
    %1353 = vmatpush1.msra.mxu0 %v407
    %1354 = vmatprep.subr.mxu0 %v412
    %1355 = vmatpush1.msra.mxu0 %v411
    %1356 = vmatprep.subr.mxu0 %v416
    %1357 = vmatpush1.msra.mxu0 %v415
    %1358 = vmatprep.subr.mxu0 %v420
    %1359 = vmatpush1.msra.mxu0 %v419
    %1360 = vmatprep.subr.mxu0 %v424
    %1361 = vmatpush1.msra.mxu0 %v423
    %1362 = vmatprep.subr.mxu0 0.0
    %1363 = vmatpush1.msra.mxu0 0.0
    %1364 = vmatprep.subr.mxu0 0.0
    %1365 = vmatpush1.msra.mxu0 0.0
    %1366 = vmatprep.subr.mxu0 0.0
    %1367 = vmatpush1.msra.mxu0 0.0
    %1368 = vmatprep.subr.mxu0 0.0
    %1369 = vmatpush1.msra.mxu0 0.0
    %1370 = vmatprep.subr.mxu0 0.0
    %1371 = vmatpush1.msra.mxu0 0.0
    %1372 = vmatprep.subr.mxu0 0.0
    %1373 = vmatpush1.msra.mxu0 0.0
    %1374 = vmatprep.subr.mxu0 0.0
    %1375 = vmatpush1.msra.mxu0 0.0
    %1376 = vmatprep.subr.mxu0 0.0
    %1377 = vmatpush1.msra.mxu0 0.0
    %1378 = vmatprep.subr.mxu0 0.0
    %1379 = vmatpush1.msra.mxu0 0.0
    %1380 = vmatprep.subr.mxu0 0.0
    %1381 = vmatpush1.msra.mxu0 0.0
    %1382 = vmatprep.subr.mxu0 0.0
    %1383 = vmatpush1.msra.mxu0 0.0
    %1384 = vmatprep.subr.mxu0 0.0
    %1385 = vmatpush1.msra.mxu0 0.0
    %1386 = vmatprep.subr.mxu0 0.0
    %1387 = vmatpush1.msra.mxu0 0.0
    %1388 = vmatprep.subr.mxu0 0.0
    %1389 = vmatpush1.msra.mxu0 0.0
    %1390 = vmatprep.subr.mxu0 0.0
    %1391 = vmatpush1.msra.mxu0 0.0
    %1392 = vmatprep.subr.mxu0 0.0
    %1393 = vmatpush1.msra.mxu0 0.0
    %1394 = vmatprep.mubr.f32.mxu0 0.0
    %1395 = vmatmul.mubr.f32.gmra.mrb[0].mxu0 %v1320
    %v1396 = vpop.f32.mrb[0].mxu0
    %v1397 = vadd.f32 0.0, %v1396
    %v1398 = vpop.f32.mrb[0].mxu0
    %v1399 = vadd.f32 0.0, %v1398
    %1400 = vdwg.mxu0
    %1401 = vmatprep.subr.mxu0 %v366
    %1402 = vmatpush1.msra.mxu0 %v365
    %1403 = vmatprep.subr.mxu0 %v370
    %1404 = vmatpush1.msra.mxu0 %v369
    %1405 = vmatprep.subr.mxu0 %v374
    %1406 = vmatpush1.msra.mxu0 %v373
    %1407 = vmatprep.subr.mxu0 %v378
    %1408 = vmatpush1.msra.mxu0 %v377
    %1409 = vmatprep.subr.mxu0 %v382
    %1410 = vmatpush1.msra.mxu0 %v381
    %1411 = vmatprep.subr.mxu0 %v386
    %1412 = vmatpush1.msra.mxu0 %v385
    %1413 = vmatprep.subr.mxu0 %v390
    %1414 = vmatpush1.msra.mxu0 %v389
    %1415 = vmatprep.subr.mxu0 %v394
    %1416 = vmatpush1.msra.mxu0 %v393
    %1417 = vmatprep.subr.mxu0 %v398
    %1418 = vmatpush1.msra.mxu0 %v397
    %1419 = vmatprep.subr.mxu0 %v402
    %1420 = vmatpush1.msra.mxu0 %v401
    %1421 = vmatprep.subr.mxu0 %v406
    %1422 = vmatpush1.msra.mxu0 %v405
    %1423 = vmatprep.subr.mxu0 %v410
    %1424 = vmatpush1.msra.mxu0 %v409
    %1425 = vmatprep.subr.mxu0 %v414
    %1426 = vmatpush1.msra.mxu0 %v413
    %1427 = vmatprep.subr.mxu0 %v418
    %1428 = vmatpush1.msra.mxu0 %v417
    %1429 = vmatprep.subr.mxu0 %v422
    %1430 = vmatpush1.msra.mxu0 %v421
    %1431 = vmatprep.subr.mxu0 %v426
    %1432 = vmatpush1.msra.mxu0 %v425
    %1433 = vmatprep.subr.mxu0 0.0
    %1434 = vmatpush1.msra.mxu0 0.0
    %1435 = vmatprep.subr.mxu0 0.0
    %1436 = vmatpush1.msra.mxu0 0.0
    %1437 = vmatprep.subr.mxu0 0.0
    %1438 = vmatpush1.msra.mxu0 0.0
    %1439 = vmatprep.subr.mxu0 0.0
    %1440 = vmatpush1.msra.mxu0 0.0
    %1441 = vmatprep.subr.mxu0 0.0
    %1442 = vmatpush1.msra.mxu0 0.0
    %1443 = vmatprep.subr.mxu0 0.0
    %1444 = vmatpush1.msra.mxu0 0.0
    %1445 = vmatprep.subr.mxu0 0.0
    %1446 = vmatpush1.msra.mxu0 0.0
    %1447 = vmatprep.subr.mxu0 0.0
    %1448 = vmatpush1.msra.mxu0 0.0
    %1449 = vmatprep.subr.mxu0 0.0
    %1450 = vmatpush1.msra.mxu0 0.0
    %1451 = vmatprep.subr.mxu0 0.0
    %1452 = vmatpush1.msra.mxu0 0.0
    %1453 = vmatprep.subr.mxu0 0.0
    %1454 = vmatpush1.msra.mxu0 0.0
    %1455 = vmatprep.subr.mxu0 0.0
    %1456 = vmatpush1.msra.mxu0 0.0
    %1457 = vmatprep.subr.mxu0 0.0
    %1458 = vmatpush1.msra.mxu0 0.0
    %1459 = vmatprep.subr.mxu0 0.0
    %1460 = vmatpush1.msra.mxu0 0.0
    %1461 = vmatprep.subr.mxu0 0.0
    %1462 = vmatpush1.msra.mxu0 0.0
    %1463 = vmatprep.subr.mxu0 0.0
    %1464 = vmatpush1.msra.mxu0 0.0
    %1465 = vmatprep.mubr.f32.mxu0 0.0
    %1466 = vmatmul.mubr.f32.gmra.mrb[0].mxu0 %v1320
    %v1467 = vpop.f32.mrb[0].mxu0
    %v1468 = vadd.f32 0.0, %v1467
    %v1469 = vpop.f32.mrb[0].mxu0
    %v1470 = vadd.f32 0.0, %v1469
    %1471 = vdwg.mxu0
    %v1472 = vadd.f32 %v1326, %v1397
    %v1473 = vadd.f32 %v1327, %v1399
    %v1474 = vadd.f32 %v1328, %v1468
    %v1475 = vadd.f32 %v1329, %v1470
    %v1476 = vxor.u32 %v1472, 2147483648
    %v1477 = vxor.u32 %v1473, 2147483648
    %v1478 = vxor.u32 %v1474, 2147483648
    %v1479 = vmul.f32 %v1476, 1.442695
    %v1480 = vpow.pop %v1479
    %v1481 = vmul.f32 %v1477, 1.442695
    %v1482 = vpow.pop %v1481
    %v1483 = vmul.f32 %v1478, 1.442695
    %v1484 = vpow.pop %v1483
    %v1485 = vadd.f32 %v1480, 1.0
    %v1486 = vadd.f32 %v1482, 1.0
    %v1487 = vadd.f32 %v1484, 1.0
    %v1488 = vrcp.pop %v1485
    %v1489 = vmul.f32 1.0, %v1488
    %v1490 = vrcp.pop %v1486
    %v1491 = vmul.f32 1.0, %v1490
    %v1492 = vrcp.pop %v1487
    %v1493 = vmul.f32 1.0, %v1492
    %v1494 = vtanh.pop %v1475
    %v1495 = vmul.f32 %v1491, %v1318
    %v1496 = vmul.f32 %v1489, %v1494
    %v1497 = vadd.f32 %v1495, %v1496
    %v1498 = vtanh.pop %v1497
    %v1499 = vmul.f32 %v1493, %v1498
    %s1500 = scalar_lea.vmem [#allocation8], 40
    %1501 = vst [vmem:[%s1500] sm:$0xff] %v1499
    %s1502 = smul.u32 6, 4
    %s1503 = smul.addr %s1502, 8
    %s1504 = scalar_lea.vmem [#allocation4], %s1503
    %v1505 = vld [vmem:[%s1504] sm:$0xff]
    %v1506 = vld [vmem:[%s1504 + $0x8] sm:$0xff]
    %v1507 = vld [vmem:[%s1504 + $0x10] sm:$0xff]
    %v1508 = vld [vmem:[%s1504 + $0x18] sm:$0xff]
    %1509 = vmatprep.subr.mxu0 %v364
    %1510 = vmatpush1.msra.mxu0 %v363
    %1511 = vmatprep.subr.mxu0 %v368
    %1512 = vmatpush1.msra.mxu0 %v367
    %1513 = vmatprep.subr.mxu0 %v372
    %1514 = vmatpush1.msra.mxu0 %v371
    %1515 = vmatprep.subr.mxu0 %v376
    %1516 = vmatpush1.msra.mxu0 %v375
    %1517 = vmatprep.subr.mxu0 %v380
    %1518 = vmatpush1.msra.mxu0 %v379
    %1519 = vmatprep.subr.mxu0 %v384
    %1520 = vmatpush1.msra.mxu0 %v383
    %1521 = vmatprep.subr.mxu0 %v388
    %1522 = vmatpush1.msra.mxu0 %v387
    %1523 = vmatprep.subr.mxu0 %v392
    %1524 = vmatpush1.msra.mxu0 %v391
    %1525 = vmatprep.subr.mxu0 %v396
    %1526 = vmatpush1.msra.mxu0 %v395
    %1527 = vmatprep.subr.mxu0 %v400
    %1528 = vmatpush1.msra.mxu0 %v399
    %1529 = vmatprep.subr.mxu0 %v404
    %1530 = vmatpush1.msra.mxu0 %v403
    %1531 = vmatprep.subr.mxu0 %v408
    %1532 = vmatpush1.msra.mxu0 %v407
    %1533 = vmatprep.subr.mxu0 %v412
    %1534 = vmatpush1.msra.mxu0 %v411
    %1535 = vmatprep.subr.mxu0 %v416
    %1536 = vmatpush1.msra.mxu0 %v415
    %1537 = vmatprep.subr.mxu0 %v420
    %1538 = vmatpush1.msra.mxu0 %v419
    %1539 = vmatprep.subr.mxu0 %v424
    %1540 = vmatpush1.msra.mxu0 %v423
    %1541 = vmatprep.subr.mxu0 0.0
    %1542 = vmatpush1.msra.mxu0 0.0
    %1543 = vmatprep.subr.mxu0 0.0
    %1544 = vmatpush1.msra.mxu0 0.0
    %1545 = vmatprep.subr.mxu0 0.0
    %1546 = vmatpush1.msra.mxu0 0.0
    %1547 = vmatprep.subr.mxu0 0.0
    %1548 = vmatpush1.msra.mxu0 0.0
    %1549 = vmatprep.subr.mxu0 0.0
    %1550 = vmatpush1.msra.mxu0 0.0
    %1551 = vmatprep.subr.mxu0 0.0
    %1552 = vmatpush1.msra.mxu0 0.0
    %1553 = vmatprep.subr.mxu0 0.0
    %1554 = vmatpush1.msra.mxu0 0.0
    %1555 = vmatprep.subr.mxu0 0.0
    %1556 = vmatpush1.msra.mxu0 0.0
    %1557 = vmatprep.subr.mxu0 0.0
    %1558 = vmatpush1.msra.mxu0 0.0
    %1559 = vmatprep.subr.mxu0 0.0
    %1560 = vmatpush1.msra.mxu0 0.0
    %1561 = vmatprep.subr.mxu0 0.0
    %1562 = vmatpush1.msra.mxu0 0.0
    %1563 = vmatprep.subr.mxu0 0.0
    %1564 = vmatpush1.msra.mxu0 0.0
    %1565 = vmatprep.subr.mxu0 0.0
    %1566 = vmatpush1.msra.mxu0 0.0
    %1567 = vmatprep.subr.mxu0 0.0
    %1568 = vmatpush1.msra.mxu0 0.0
    %1569 = vmatprep.subr.mxu0 0.0
    %1570 = vmatpush1.msra.mxu0 0.0
    %1571 = vmatprep.subr.mxu0 0.0
    %1572 = vmatpush1.msra.mxu0 0.0
    %1573 = vmatprep.mubr.f32.mxu0 0.0
    %1574 = vmatmul.mubr.f32.gmra.mrb[0].mxu0 %v1499
    %v1575 = vpop.f32.mrb[0].mxu0
    %v1576 = vadd.f32 0.0, %v1575
    %v1577 = vpop.f32.mrb[0].mxu0
    %v1578 = vadd.f32 0.0, %v1577
    %1579 = vdwg.mxu0
    %1580 = vmatprep.subr.mxu0 %v366
    %1581 = vmatpush1.msra.mxu0 %v365
    %1582 = vmatprep.subr.mxu0 %v370
    %1583 = vmatpush1.msra.mxu0 %v369
    %1584 = vmatprep.subr.mxu0 %v374
    %1585 = vmatpush1.msra.mxu0 %v373
    %1586 = vmatprep.subr.mxu0 %v378
    %1587 = vmatpush1.msra.mxu0 %v377
    %1588 = vmatprep.subr.mxu0 %v382
    %1589 = vmatpush1.msra.mxu0 %v381
    %1590 = vmatprep.subr.mxu0 %v386
    %1591 = vmatpush1.msra.mxu0 %v385
    %1592 = vmatprep.subr.mxu0 %v390
    %1593 = vmatpush1.msra.mxu0 %v389
    %1594 = vmatprep.subr.mxu0 %v394
    %1595 = vmatpush1.msra.mxu0 %v393
    %1596 = vmatprep.subr.mxu0 %v398
    %1597 = vmatpush1.msra.mxu0 %v397
    %1598 = vmatprep.subr.mxu0 %v402
    %1599 = vmatpush1.msra.mxu0 %v401
    %1600 = vmatprep.subr.mxu0 %v406
    %1601 = vmatpush1.msra.mxu0 %v405
    %1602 = vmatprep.subr.mxu0 %v410
    %1603 = vmatpush1.msra.mxu0 %v409
    %1604 = vmatprep.subr.mxu0 %v414
    %1605 = vmatpush1.msra.mxu0 %v413
    %1606 = vmatprep.subr.mxu0 %v418
    %1607 = vmatpush1.msra.mxu0 %v417
    %1608 = vmatprep.subr.mxu0 %v422
    %1609 = vmatpush1.msra.mxu0 %v421
    %1610 = vmatprep.subr.mxu0 %v426
    %1611 = vmatpush1.msra.mxu0 %v425
    %1612 = vmatprep.subr.mxu0 0.0
    %1613 = vmatpush1.msra.mxu0 0.0
    %1614 = vmatprep.subr.mxu0 0.0
    %1615 = vmatpush1.msra.mxu0 0.0
    %1616 = vmatprep.subr.mxu0 0.0
    %1617 = vmatpush1.msra.mxu0 0.0
    %1618 = vmatprep.subr.mxu0 0.0
    %1619 = vmatpush1.msra.mxu0 0.0
    %1620 = vmatprep.subr.mxu0 0.0
    %1621 = vmatpush1.msra.mxu0 0.0
    %1622 = vmatprep.subr.mxu0 0.0
    %1623 = vmatpush1.msra.mxu0 0.0
    %1624 = vmatprep.subr.mxu0 0.0
    %1625 = vmatpush1.msra.mxu0 0.0
    %1626 = vmatprep.subr.mxu0 0.0
    %1627 = vmatpush1.msra.mxu0 0.0
    %1628 = vmatprep.subr.mxu0 0.0
    %1629 = vmatpush1.msra.mxu0 0.0
    %1630 = vmatprep.subr.mxu0 0.0
    %1631 = vmatpush1.msra.mxu0 0.0
    %1632 = vmatprep.subr.mxu0 0.0
    %1633 = vmatpush1.msra.mxu0 0.0
    %1634 = vmatprep.subr.mxu0 0.0
    %1635 = vmatpush1.msra.mxu0 0.0
    %1636 = vmatprep.subr.mxu0 0.0
    %1637 = vmatpush1.msra.mxu0 0.0
    %1638 = vmatprep.subr.mxu0 0.0
    %1639 = vmatpush1.msra.mxu0 0.0
    %1640 = vmatprep.subr.mxu0 0.0
    %1641 = vmatpush1.msra.mxu0 0.0
    %1642 = vmatprep.subr.mxu0 0.0
    %1643 = vmatpush1.msra.mxu0 0.0
    %1644 = vmatprep.mubr.f32.mxu0 0.0
    %1645 = vmatmul.mubr.f32.gmra.mrb[0].mxu0 %v1499
    %v1646 = vpop.f32.mrb[0].mxu0
    %v1647 = vadd.f32 0.0, %v1646
    %v1648 = vpop.f32.mrb[0].mxu0
    %v1649 = vadd.f32 0.0, %v1648
    %1650 = vdwg.mxu0
    %v1651 = vadd.f32 %v1505, %v1576
    %v1652 = vadd.f32 %v1506, %v1578
    %v1653 = vadd.f32 %v1507, %v1647
    %v1654 = vadd.f32 %v1508, %v1649
    %v1655 = vxor.u32 %v1651, 2147483648
    %v1656 = vxor.u32 %v1652, 2147483648
    %v1657 = vxor.u32 %v1653, 2147483648
    %v1658 = vmul.f32 %v1655, 1.442695
    %v1659 = vpow.pop %v1658
    %v1660 = vmul.f32 %v1656, 1.442695
    %v1661 = vpow.pop %v1660
    %v1662 = vmul.f32 %v1657, 1.442695
    %v1663 = vpow.pop %v1662
    %v1664 = vadd.f32 %v1659, 1.0
    %v1665 = vadd.f32 %v1661, 1.0
    %v1666 = vadd.f32 %v1663, 1.0
    %v1667 = vrcp.pop %v1664
    %v1668 = vmul.f32 1.0, %v1667
    %v1669 = vrcp.pop %v1665
    %v1670 = vmul.f32 1.0, %v1669
    %v1671 = vrcp.pop %v1666
    %v1672 = vmul.f32 1.0, %v1671
    %v1673 = vtanh.pop %v1654
    %v1674 = vmul.f32 %v1670, %v1497
    %v1675 = vmul.f32 %v1668, %v1673
    %v1676 = vadd.f32 %v1674, %v1675
    %v1677 = vtanh.pop %v1676
    %v1678 = vmul.f32 %v1672, %v1677
    %s1679 = scalar_lea.vmem [#allocation8], 48
    %1680 = vst [vmem:[%s1679] sm:$0xff] %v1678
    %s1681 = smul.u32 7, 4
    %s1682 = smul.addr %s1681, 8
    %s1683 = scalar_lea.vmem [#allocation4], %s1682
    %v1684 = vld [vmem:[%s1683] sm:$0xff]
    %v1685 = vld [vmem:[%s1683 + $0x8] sm:$0xff]
    %v1686 = vld [vmem:[%s1683 + $0x10] sm:$0xff]
    %v1687 = vld [vmem:[%s1683 + $0x18] sm:$0xff]
    %1688 = vmatprep.subr.mxu0 %v364
    %1689 = vmatpush1.msra.mxu0 %v363
    %1690 = vmatprep.subr.mxu0 %v368
    %1691 = vmatpush1.msra.mxu0 %v367
    %1692 = vmatprep.subr.mxu0 %v372
    %1693 = vmatpush1.msra.mxu0 %v371
    %1694 = vmatprep.subr.mxu0 %v376
    %1695 = vmatpush1.msra.mxu0 %v375
    %1696 = vmatprep.subr.mxu0 %v380
    %1697 = vmatpush1.msra.mxu0 %v379
    %1698 = vmatprep.subr.mxu0 %v384
    %1699 = vmatpush1.msra.mxu0 %v383
    %1700 = vmatprep.subr.mxu0 %v388
    %1701 = vmatpush1.msra.mxu0 %v387
    %1702 = vmatprep.subr.mxu0 %v392
    %1703 = vmatpush1.msra.mxu0 %v391
    %1704 = vmatprep.subr.mxu0 %v396
    %1705 = vmatpush1.msra.mxu0 %v395
    %1706 = vmatprep.subr.mxu0 %v400
    %1707 = vmatpush1.msra.mxu0 %v399
    %1708 = vmatprep.subr.mxu0 %v404
    %1709 = vmatpush1.msra.mxu0 %v403
    %1710 = vmatprep.subr.mxu0 %v408
    %1711 = vmatpush1.msra.mxu0 %v407
    %1712 = vmatprep.subr.mxu0 %v412
    %1713 = vmatpush1.msra.mxu0 %v411
    %1714 = vmatprep.subr.mxu0 %v416
    %1715 = vmatpush1.msra.mxu0 %v415
    %1716 = vmatprep.subr.mxu0 %v420
    %1717 = vmatpush1.msra.mxu0 %v419
    %1718 = vmatprep.subr.mxu0 %v424
    %1719 = vmatpush1.msra.mxu0 %v423
    %1720 = vmatprep.subr.mxu0 0.0
    %1721 = vmatpush1.msra.mxu0 0.0
    %1722 = vmatprep.subr.mxu0 0.0
    %1723 = vmatpush1.msra.mxu0 0.0
    %1724 = vmatprep.subr.mxu0 0.0
    %1725 = vmatpush1.msra.mxu0 0.0
    %1726 = vmatprep.subr.mxu0 0.0
    %1727 = vmatpush1.msra.mxu0 0.0
    %1728 = vmatprep.subr.mxu0 0.0
    %1729 = vmatpush1.msra.mxu0 0.0
    %1730 = vmatprep.subr.mxu0 0.0
    %1731 = vmatpush1.msra.mxu0 0.0
    %1732 = vmatprep.subr.mxu0 0.0
    %1733 = vmatpush1.msra.mxu0 0.0
    %1734 = vmatprep.subr.mxu0 0.0
    %1735 = vmatpush1.msra.mxu0 0.0
    %1736 = vmatprep.subr.mxu0 0.0
    %1737 = vmatpush1.msra.mxu0 0.0
    %1738 = vmatprep.subr.mxu0 0.0
    %1739 = vmatpush1.msra.mxu0 0.0
    %1740 = vmatprep.subr.mxu0 0.0
    %1741 = vmatpush1.msra.mxu0 0.0
    %1742 = vmatprep.subr.mxu0 0.0
    %1743 = vmatpush1.msra.mxu0 0.0
    %1744 = vmatprep.subr.mxu0 0.0
    %1745 = vmatpush1.msra.mxu0 0.0
    %1746 = vmatprep.subr.mxu0 0.0
    %1747 = vmatpush1.msra.mxu0 0.0
    %1748 = vmatprep.subr.mxu0 0.0
    %1749 = vmatpush1.msra.mxu0 0.0
    %1750 = vmatprep.subr.mxu0 0.0
    %1751 = vmatpush1.msra.mxu0 0.0
    %1752 = vmatprep.mubr.f32.mxu0 0.0
    %1753 = vmatmul.mubr.f32.gmra.mrb[0].mxu0 %v1678
    %v1754 = vpop.f32.mrb[0].mxu0
    %v1755 = vadd.f32 0.0, %v1754
    %v1756 = vpop.f32.mrb[0].mxu0
    %v1757 = vadd.f32 0.0, %v1756
    %1758 = vdwg.mxu0
    %1759 = vmatprep.subr.mxu0 %v366
    %1760 = vmatpush1.msra.mxu0 %v365
    %1761 = vmatprep.subr.mxu0 %v370
    %1762 = vmatpush1.msra.mxu0 %v369
    %1763 = vmatprep.subr.mxu0 %v374
    %1764 = vmatpush1.msra.mxu0 %v373
    %1765 = vmatprep.subr.mxu0 %v378
    %1766 = vmatpush1.msra.mxu0 %v377
    %1767 = vmatprep.subr.mxu0 %v382
    %1768 = vmatpush1.msra.mxu0 %v381
    %1769 = vmatprep.subr.mxu0 %v386
    %1770 = vmatpush1.msra.mxu0 %v385
    %1771 = vmatprep.subr.mxu0 %v390
    %1772 = vmatpush1.msra.mxu0 %v389
    %1773 = vmatprep.subr.mxu0 %v394
    %1774 = vmatpush1.msra.mxu0 %v393
    %1775 = vmatprep.subr.mxu0 %v398
    %1776 = vmatpush1.msra.mxu0 %v397
    %1777 = vmatprep.subr.mxu0 %v402
    %1778 = vmatpush1.msra.mxu0 %v401
    %1779 = vmatprep.subr.mxu0 %v406
    %1780 = vmatpush1.msra.mxu0 %v405
    %1781 = vmatprep.subr.mxu0 %v410
    %1782 = vmatpush1.msra.mxu0 %v409
    %1783 = vmatprep.subr.mxu0 %v414
    %1784 = vmatpush1.msra.mxu0 %v413
    %1785 = vmatprep.subr.mxu0 %v418
    %1786 = vmatpush1.msra.mxu0 %v417
    %1787 = vmatprep.subr.mxu0 %v422
    %1788 = vmatpush1.msra.mxu0 %v421
    %1789 = vmatprep.subr.mxu0 %v426
    %1790 = vmatpush1.msra.mxu0 %v425
    %1791 = vmatprep.subr.mxu0 0.0
    %1792 = vmatpush1.msra.mxu0 0.0
    %1793 = vmatprep.subr.mxu0 0.0
    %1794 = vmatpush1.msra.mxu0 0.0
    %1795 = vmatprep.subr.mxu0 0.0
    %1796 = vmatpush1.msra.mxu0 0.0
    %1797 = vmatprep.subr.mxu0 0.0
    %1798 = vmatpush1.msra.mxu0 0.0
    %1799 = vmatprep.subr.mxu0 0.0
    %1800 = vmatpush1.msra.mxu0 0.0
    %1801 = vmatprep.subr.mxu0 0.0
    %1802 = vmatpush1.msra.mxu0 0.0
    %1803 = vmatprep.subr.mxu0 0.0
    %1804 = vmatpush1.msra.mxu0 0.0
    %1805 = vmatprep.subr.mxu0 0.0
    %1806 = vmatpush1.msra.mxu0 0.0
    %1807 = vmatprep.subr.mxu0 0.0
    %1808 = vmatpush1.msra.mxu0 0.0
    %1809 = vmatprep.subr.mxu0 0.0
    %1810 = vmatpush1.msra.mxu0 0.0
    %1811 = vmatprep.subr.mxu0 0.0
    %1812 = vmatpush1.msra.mxu0 0.0
    %1813 = vmatprep.subr.mxu0 0.0
    %1814 = vmatpush1.msra.mxu0 0.0
    %1815 = vmatprep.subr.mxu0 0.0
    %1816 = vmatpush1.msra.mxu0 0.0
    %1817 = vmatprep.subr.mxu0 0.0
    %1818 = vmatpush1.msra.mxu0 0.0
    %1819 = vmatprep.subr.mxu0 0.0
    %1820 = vmatpush1.msra.mxu0 0.0
    %1821 = vmatprep.subr.mxu0 0.0
    %1822 = vmatpush1.msra.mxu0 0.0
    %1823 = vmatprep.mubr.f32.mxu0 0.0
    %1824 = vmatmul.mubr.f32.gmra.mrb[0].mxu0 %v1678
    %v1825 = vpop.f32.mrb[0].mxu0
    %v1826 = vadd.f32 0.0, %v1825
    %v1827 = vpop.f32.mrb[0].mxu0
    %v1828 = vadd.f32 0.0, %v1827
    %1829 = vdwg.mxu0
    %v1830 = vadd.f32 %v1684, %v1755
    %v1831 = vadd.f32 %v1685, %v1757
    %v1832 = vadd.f32 %v1686, %v1826
    %v1833 = vadd.f32 %v1687, %v1828
    %v1834 = vxor.u32 %v1830, 2147483648
    %v1835 = vxor.u32 %v1831, 2147483648
    %v1836 = vxor.u32 %v1832, 2147483648
    %v1837 = vmul.f32 %v1834, 1.442695
    %v1838 = vpow.pop %v1837
    %v1839 = vmul.f32 %v1835, 1.442695
    %v1840 = vpow.pop %v1839
    %v1841 = vmul.f32 %v1836, 1.442695
    %v1842 = vpow.pop %v1841
    %v1843 = vadd.f32 %v1838, 1.0
    %v1844 = vadd.f32 %v1840, 1.0
    %v1845 = vadd.f32 %v1842, 1.0
    %v1846 = vrcp.pop %v1843
    %v1847 = vmul.f32 1.0, %v1846
    %v1848 = vrcp.pop %v1844
    %v1849 = vmul.f32 1.0, %v1848
    %v1850 = vrcp.pop %v1845
    %v1851 = vmul.f32 1.0, %v1850
    %v1852 = vtanh.pop %v1833
    %v1853 = vmul.f32 %v1849, %v1676
    %v1854 = vmul.f32 %v1847, %v1852
    %v1855 = vadd.f32 %v1853, %v1854
    %v1856 = vtanh.pop %v1855
    %v1857 = vmul.f32 %v1851, %v1856
    %s1858 = scalar_lea.vmem [#allocation8], 56
    %1859 = vst [vmem:[%s1858] sm:$0xff] %v1857
    %1860 = vst [vmem:[#allocation2] sm:$0xff] %v1857
    %1861 = vst [vmem:[#allocation3] sm:$0xff] %v1855
    // Predicated region
    $region26: #{tpu_custom_call.1} parent=1 // pred_check
      %p1862 = pneg %p36
    $region27: #{tpu_custom_call.1} parent=1 // pred_check_branch
      %1864 = sbr.rel (%p1862) target = $region29
    $region28: #{tpu_custom_call.1} parent=1 // pred_region
      %1865 = vst [vmem:[#allocation9] sm:$0xff] %v1857
      %1866 = vst [vmem:[#allocation11] sm:$0xff] %v1855
    $region29: #{tpu_custom_call.1} parent=1 // pred_fallthru
      _
    // Predicated region
    $region30: #{tpu_custom_call.1} parent=1 // pred_check
      _
    $region31: #{tpu_custom_call.1} parent=1 // pred_check_branch
      %1868 = sbr.rel (0) target = $region33
    $region32: #{tpu_custom_call.1} parent=1 // pred_region
      %s1870 = ssub.s32 1024, 1024
      %1871 = vsyncadd [#allocation7], %s1870
      %s1872 = sshll.u32 [#allocation8], 4
      %s1873 = int_to_ptr.vmem [resolvable:$true] %s1872
      %1878 = dma.vmem_to_hbm [thread:$0]  %s1873, 1024, %s4, [#allocation7], 128, 128, 8
    $region33: #{tpu_custom_call.1} parent=1 // pred_fallthru
      _
    // Predicated region
    $region34: #{tpu_custom_call.1} parent=1 // pred_check
      _
    $region35: #{tpu_custom_call.1} parent=1 // pred_check_branch
      %1880 = sbr.rel (0) target = $region37
    $region36: #{tpu_custom_call.1} parent=1 // pred_region
      %s1882 = ssub.s32 128, 128
      %1883 = vsyncadd [#allocation10], %s1882
      %s1885 = sshll.u32 [#allocation9], 4
      %s1886 = int_to_ptr.vmem [resolvable:$true] %s1885
      %1888 = dma.vmem_to_hbm [thread:$0]  %s1886, 128, %s5, [#allocation10]
    $region37: #{tpu_custom_call.1} parent=1 // pred_fallthru
      _
    // Predicated region
    $region38: #{tpu_custom_call.1} parent=1 // pred_check
      _
    $region39: #{tpu_custom_call.1} parent=1 // pred_check_branch
      %1890 = sbr.rel (0) target = $region41
    $region40: #{tpu_custom_call.1} parent=1 // pred_region
      %s1892 = ssub.s32 128, 128
      %1893 = vsyncadd [#allocation10], %s1892
      %s1895 = sshll.u32 [#allocation11], 4
      %s1896 = int_to_ptr.vmem [resolvable:$true] %s1895
      %1898 = dma.vmem_to_hbm [thread:$0]  %s1896, 128, %s6, [#allocation10]
    $region41: #{tpu_custom_call.1} parent=1 // pred_fallthru
      _
    // Predicated region
    $region42: #{tpu_custom_call.1} parent=1 // pred_check
      _
    $region43: #{tpu_custom_call.1} parent=1 // pred_check_branch
      %1900 = sbr.rel (0) target = $region45
    $region44: #{tpu_custom_call.1} parent=1 // pred_region
      %1901 = dma.done [#allocation7], 1024
    $region45: #{tpu_custom_call.1} parent=1 // pred_fallthru
      _
    // Predicated region
    $region46: #{tpu_custom_call.1} parent=1 // pred_check
      _
    $region47: #{tpu_custom_call.1} parent=1 // pred_check_branch
      %1903 = sbr.rel (0) target = $region49
    $region48: #{tpu_custom_call.1} parent=1 // pred_region
      %1904 = dma.done [#allocation10], 128
    $region49: #{tpu_custom_call.1} parent=1 // pred_fallthru
      _
    // Predicated region
    $region50: #{tpu_custom_call.1} parent=1 // pred_check
      _
    $region51: #{tpu_custom_call.1} parent=1 // pred_check_branch
      %1906 = sbr.rel (0) target = $region53
    $region52: #{tpu_custom_call.1} parent=1 // pred_region
      %1907 = dma.done [#allocation10], 128
    $region53: #{tpu_custom_call.1} parent=1 // pred_fallthru
      _
    %1908 = vsyncpa [#allocation6], 1
    %1909 = vsyncpa [#allocation7], 1
    %1910 = vsyncpa [#allocation10], 1

</llo_original>
